<compile_context>
chip_gen: v6e
topology: v6e:2x2x1
jax: 0.10.0
libtpu: 0.0.40
codegen_flags: <defaults>
</compile_context>

<pallas_src>
import math

import jax
import jax.numpy as jnp
from jax.experimental import pallas as pl
from jax.experimental.pallas import tpu as pltpu

# ----------------------------- model config ---------------------------------
DIM = 64
N_HEADS = 4
QK_NOPE = 16
QK_ROPE = 8
QK_HEAD_DIM = QK_NOPE + QK_ROPE          # 24
HEAD_BLK = 32                            # per-head q/k block padded to 32 lanes
HEAD_PAD = HEAD_BLK - QK_HEAD_DIM        # 8 zero lanes
V_HEAD = 16
KV_LORA = 32
INTER_DIM = 128
EPS = 1e-6
SOFTMAX_SCALE = QK_HEAD_DIM ** -0.5      # max_seq_len <= original_seq_len
NEG_INF = -1e30

B = 2
S = 8
START_POS = 0

# fused "A"-projection column layout (all offsets 128-lane / vreg aligned):
#   [ q_raw | q_swap | kpe_raw (x4) | kpe_swap (x4) | wkv_a_kv ]
_Q_RAW = 0
_Q_SWAP = _Q_RAW + N_HEADS * HEAD_BLK          # 128
_KPE_RAW = _Q_SWAP + N_HEADS * HEAD_BLK        # 256
_KPE_SWAP = _KPE_RAW + N_HEADS * HEAD_BLK      # 384
_KV = _KPE_SWAP + N_HEADS * HEAD_BLK           # 512
_WQA_COLS = _KV + KV_LORA                      # 544

# fused wkv_b column layout: [ k_nope padded to 32/head | v (4*16 contiguous) ]
_VB = N_HEADS * HEAD_BLK                       # 128
_WKVB_COLS = _VB + N_HEADS * V_HEAD            # 192


# ----------------------------- fused Pallas kernel ---------------------------
def _block_kernel(x_ref, cos_ref, sin_ref,
                  attn_nw_ref, kv_nw_ref, ffn_nw_ref,
                  wqa_ref, wkv_b_ref, wo_ref, w13_ref, w2_ref,
                  o_ref):
    f32 = jnp.float32
    bf16 = jnp.bfloat16
    T = x_ref.shape[0]                               # tokens of this sequence

    x = x_ref[...]                                   # (T, DIM) f32
    cos = cos_ref[...]                               # (T, 128) per-head [1*16,cos8,0*8]
    sin = sin_ref[...]                               # (T, 128) per-head [0*16,sin8,0*8]

    # causal mask generated in-kernel (one sequence per grid step)
    row = jax.lax.broadcasted_iota(jnp.int32, (T, T), 0)
    col = jax.lax.broadcasted_iota(jnp.int32, (T, T), 1)
    mask = jnp.where(col <= row, 0.0, NEG_INF).astype(f32)

    # ---- attention RMSNorm (f32, VPU) ----
    h = x * jax.lax.rsqrt(jnp.mean(x * x, axis=-1, keepdims=True) + EPS)
    h = h * attn_nw_ref[...]

    # ---- one fused projection: wq, wkv_a and their rope-swapped columns ----
    qa = jnp.dot(h.astype(bf16), wqa_ref[...], preferred_element_type=f32)  # (T,544)

    # rope for all q heads and the (per-head replicated) positional key: one fma each
    q_full = (qa[:, _Q_RAW:_Q_RAW + N_HEADS * HEAD_BLK] * cos
              + qa[:, _Q_SWAP:_Q_SWAP + N_HEADS * HEAD_BLK] * sin)          # (T,128)
    k_pe_all = (qa[:, _KPE_RAW:_KPE_RAW + N_HEADS * HEAD_BLK] * cos
                + qa[:, _KPE_SWAP:_KPE_SWAP + N_HEADS * HEAD_BLK] * sin)    # (T,128)

    # kv low-rank branch: RMSNorm + wkv_b (reordered: [k_nope padded | v_all])
    kv = qa[:, _KV:_KV + KV_LORA]
    kvn = kv * jax.lax.rsqrt(jnp.mean(kv * kv, axis=-1, keepdims=True) + EPS)
    kvn = kvn * kv_nw_ref[...]
    kv2 = jnp.dot(kvn.astype(bf16), wkv_b_ref[...],
                  preferred_element_type=f32)                               # (T,192)

    # per-head [k_nope | k_pe | 0], built with a single (T,128) add
    k_full = (kv2[:, :_VB] + k_pe_all).astype(bf16)                         # (T,128)
    v_all = kv2[:, _VB:_WKVB_COLS].astype(bf16)                             # (T,64)
    q_full_b = q_full.astype(bf16)

    dn_nt = (((1,), (1,)), ((), ()))                 # contract dim 1 of both: A @ B^T
    o_heads = []
    for hd in range(N_HEADS):                        # unrolled, no loop-carried dep
        qo = hd * HEAD_BLK
        # single contraction-32 score matmul (pad lanes of q are exactly zero)
        s = jax.lax.dot_general(q_full_b[:, qo:qo + HEAD_BLK],
                                k_full[:, qo:qo + HEAD_BLK],
                                dn_nt, preferred_element_type=f32)          # (T,T)
        s = s * SOFTMAX_SCALE + mask
        m = jnp.max(s, axis=-1, keepdims=True)
        p = jnp.exp(s - m)
        p = p * pl.reciprocal(jnp.sum(p, axis=-1, keepdims=True), approx=True)
        o_heads.append(jnp.dot(p.astype(bf16),
                               v_all[:, hd * V_HEAD:(hd + 1) * V_HEAD],
                               preferred_element_type=f32))                 # (T,16)

    # hoisted output projection: one (T,64)@(64,64) matmul instead of 4 accumulations
    o_all = jnp.concatenate(o_heads, axis=-1)                               # (T,64)
    attn = jnp.dot(o_all.astype(bf16), wo_ref[...], preferred_element_type=f32)

    x1 = x + attn                                    # residual 1 (f32)

    # ---- ffn RMSNorm + SwiGLU MLP with fused w1|w3 ----
    h2 = x1 * jax.lax.rsqrt(jnp.mean(x1 * x1, axis=-1, keepdims=True) + EPS)
    h2 = (h2 * ffn_nw_ref[...]).astype(bf16)
    h13 = jnp.dot(h2, w13_ref[...], preferred_element_type=f32)             # (T,256)
    h1 = h13[:, :INTER_DIM]
    h3 = h13[:, INTER_DIM:]
    g = (h1 * jax.nn.sigmoid(h1)) * h3
    ffn = jnp.dot(g.astype(bf16), w2_ref[...], preferred_element_type=f32)
    o_ref[...] = x1 + ffn                            # residual 2


def block_forward(fp, x, cos128, sin128):
    bsz, seqlen, _ = x.shape
    n = bsz * seqlen
    x2 = x.reshape(n, DIM)

    flops = (2 * n * (DIM * _WQA_COLS + KV_LORA * _WKVB_COLS
                      + N_HEADS * V_HEAD * DIM
                      + DIM * 2 * INTER_DIM + INTER_DIM * DIM)
             + 2 * bsz * N_HEADS * (seqlen * seqlen * HEAD_BLK
                                    + seqlen * seqlen * V_HEAD))
    args = (x2, cos128, sin128,
            fp["attn_norm"], fp["kv_norm"], fp["ffn_norm"],
            fp["wqa"], fp["wkv_b"], fp["wo"], fp["w13"], fp["w2"])
    bytes_accessed = sum(int(a.size) * a.dtype.itemsize for a in args) + n * DIM * 4
    cost = pl.CostEstimate(
        flops=int(flops),
        transcendentals=int(bsz * N_HEADS * seqlen * seqlen + n * INTER_DIM + 4 * n),
        bytes_accessed=int(bytes_accessed))

    out = pl.pallas_call(
        _block_kernel,
        out_shape=jax.ShapeDtypeStruct((n, DIM), jnp.float32),
        grid=(bsz,),
        in_specs=[
            pl.BlockSpec((seqlen, DIM), lambda b: (b, 0)),              # x
            pl.BlockSpec((seqlen, N_HEADS * HEAD_BLK), lambda b: (0, 0)),  # cos128
            pl.BlockSpec((seqlen, N_HEADS * HEAD_BLK), lambda b: (0, 0)),  # sin128
            pl.BlockSpec((1, DIM), lambda b: (0, 0)),                   # attn_norm
            pl.BlockSpec((1, KV_LORA), lambda b: (0, 0)),               # kv_norm
            pl.BlockSpec((1, DIM), lambda b: (0, 0)),                   # ffn_norm
            pl.BlockSpec((DIM, _WQA_COLS), lambda b: (0, 0)),           # wqa
            pl.BlockSpec((KV_LORA, _WKVB_COLS), lambda b: (0, 0)),      # wkv_b
            pl.BlockSpec((N_HEADS * V_HEAD, DIM), lambda b: (0, 0)),    # wo
            pl.BlockSpec((DIM, 2 * INTER_DIM), lambda b: (0, 0)),       # w13
            pl.BlockSpec((INTER_DIM, DIM), lambda b: (0, 0)),           # w2
        ],
        out_specs=pl.BlockSpec((seqlen, DIM), lambda b: (b, 0)),
        compiler_params=pltpu.CompilerParams(
            dimension_semantics=("parallel",)),      # batches → both TCs on v7x
        cost_estimate=cost,
    )(*args)
    return out.reshape(bsz, seqlen, DIM)


# ------------------------- parameter preparation ------------------------------
def init_params(key):
    ks = jax.random.split(key, 8)

    def w(k, shape):
        return 0.02 * jax.random.normal(k, shape, jnp.float32)

    return {
        "wq": w(ks[0], (DIM, N_HEADS * QK_HEAD_DIM)),
        "wkv_a": w(ks[1], (DIM, KV_LORA + QK_ROPE)),
        "wkv_b": w(ks[2], (KV_LORA, N_HEADS * (QK_NOPE + V_HEAD))),
        "wo": w(ks[3], (N_HEADS * V_HEAD, DIM)),
        "w1": w(ks[4], (DIM, INTER_DIM)),
        "w2": w(ks[5], (INTER_DIM, DIM)),
        "w3": w(ks[6], (DIM, INTER_DIM)),
        "attn_norm": jnp.ones((1, DIM), jnp.float32),
        "ffn_norm": jnp.ones((1, DIM), jnp.float32),
        "kv_norm": jnp.ones((1, KV_LORA), jnp.float32),
    }


def _pair_swap_matrix():
    perm = []
    for i in range(QK_ROPE // 2):
        perm += [2 * i + 1, 2 * i]
    return jnp.eye(QK_ROPE, dtype=jnp.float32)[jnp.array(perm)]


def fuse_params(p):
    """One-time weight prep: fold the rope pair-swap into extra weight columns,
    pad every per-head q/k block to 32 lanes, reorder wkv_b to
    [k_nope (padded) | v_all], concatenate wq|wkv_a and w1|w3, cast to bf16."""
    f32 = jnp.float32
    pm = _pair_swap_matrix()
    z8 = jnp.zeros((DIM, HEAD_PAD), f32)
    z16 = jnp.zeros((DIM, QK_NOPE), f32)

    wq = p["wq"]
    q_raw, q_swap = [], []
    for h in range(N_HEADS):
        wq_h = wq[:, h * QK_HEAD_DIM:(h + 1) * QK_HEAD_DIM]
        wq_nope, wq_pe = wq_h[:, :QK_NOPE], wq_h[:, QK_NOPE:]
        q_raw.append(jnp.concatenate([wq_nope, wq_pe, z8], axis=1))      # (DIM,32)
        q_swap.append(jnp.concatenate([z16, wq_pe @ pm, z8], axis=1))    # (DIM,32)

    wkv_a = p["wkv_a"]
    wkv_kv = wkv_a[:, :KV_LORA]
    wkv_pe = wkv_a[:, KV_LORA:]
    kpe_raw = jnp.concatenate([z16, wkv_pe, z8], axis=1)                 # (DIM,32)
    kpe_swap = jnp.concatenate([z16, wkv_pe @ pm, z8], axis=1)           # (DIM,32)

    wqa = jnp.concatenate(
        q_raw + q_swap + [kpe_raw] * N_HEADS + [kpe_swap] * N_HEADS + [wkv_kv],
        axis=1).astype(jnp.bfloat16)                                     # (DIM,544)

    # wkv_b reorder: [k_nope_h0..h3 each padded to 32 | v_h0..h3 contiguous]
    wkv_b = p["wkv_b"]
    zkv = jnp.zeros((KV_LORA, HEAD_BLK - QK_NOPE), f32)
    kn_blocks, v_blocks = [], []
    for h in range(N_HEADS):
        blk = wkv_b[:, h * (QK_NOPE + V_HEAD):(h + 1) * (QK_NOPE + V_HEAD)]
        kn_blocks.append(jnp.concatenate([blk[:, :QK_NOPE], zkv], axis=1))
        v_blocks.append(blk[:, QK_NOPE:])
    wkv_b_f = jnp.concatenate(kn_blocks + v_blocks, axis=1).astype(jnp.bfloat16)

    w13 = jnp.concatenate([p["w1"], p["w3"]], axis=1).astype(jnp.bfloat16)
    return {
        "wqa": wqa,
        "wkv_b": wkv_b_f,
        "wo": p["wo"].astype(jnp.bfloat16),
        "w13": w13,
        "w2": p["w2"].astype(jnp.bfloat16),
        "attn_norm": p["attn_norm"],
        "kv_norm": p["kv_norm"],
        "ffn_norm": p["ffn_norm"],
    }


def rope_tables(start_pos, seqlen):
    freqs = 1.0 / (10000.0 ** (jnp.arange(0, QK_ROPE, 2, jnp.float32) / QK_ROPE))
    t = jnp.arange(start_pos, start_pos + seqlen, dtype=jnp.float32)
    ang = jnp.outer(t, freqs)                                    # (S, QK_ROPE//2)
    cos, sin = jnp.cos(ang), jnp.sin(ang)
    cos_full = jnp.repeat(cos, 2, axis=-1)                       # [c0,c0,c1,c1,...]
    sin_signed = jnp.stack([-sin, sin], axis=-1).reshape(seqlen, QK_ROPE)
    ones16 = jnp.ones((seqlen, QK_NOPE), jnp.float32)
    zeros16 = jnp.zeros((seqlen, QK_NOPE), jnp.float32)
    zeros8 = jnp.zeros((seqlen, HEAD_PAD), jnp.float32)
    cos_blk = jnp.concatenate([ones16, cos_full, zeros8], axis=-1)     # (S,32)
    sin_blk = jnp.concatenate([zeros16, sin_signed, zeros8], axis=-1)  # (S,32)
    cos128 = jnp.tile(cos_blk, (1, N_HEADS))                           # (S,128)
    sin128 = jnp.tile(sin_blk, (1, N_HEADS))
    return cos128, sin128, cos, sin


# --------------------------- pure-jnp reference ------------------------------
def apply_rope(x, cos, sin):
    xr = x[..., 0::2]
    xi = x[..., 1::2]
    c = cos[None, :, None, :]
    s = sin[None, :, None, :]
    yr = xr * c - xi * s
    yi = xr * s + xi * c
    return jnp.stack([yr, yi], axis=-1).reshape(x.shape)


def ref_block(p, x, cos, sin, mask):
    def rms(t, w):
        return t * jax.lax.rsqrt(jnp.mean(t * t, -1, keepdims=True) + EPS) * w

    bsz, seqlen, _ = x.shape
    h = rms(x, p["attn_norm"][0])
    q = (h @ p["wq"]).reshape(bsz, seqlen, N_HEADS, QK_HEAD_DIM)
    q_nope, q_pe = q[..., :QK_NOPE], q[..., QK_NOPE:]
    q_pe = apply_rope(q_pe, cos, sin)
    kv = h @ p["wkv_a"]
    kv, k_pe = kv[..., :KV_LORA], kv[..., KV_LORA:]
    k_pe = apply_rope(k_pe[:, :, None, :], cos, sin)
    q_full = jnp.concatenate([q_nope, q_pe], -1)
    kv2 = (rms(kv, p["kv_norm"][0]) @ p["wkv_b"]).reshape(
        bsz, seqlen, N_HEADS, QK_NOPE + V_HEAD)
    k_nope, v = kv2[..., :QK_NOPE], kv2[..., QK_NOPE:]
    k = jnp.concatenate(
        [k_nope, jnp.broadcast_to(k_pe, (bsz, seqlen, N_HEADS, QK_ROPE))], -1)
    scores = jnp.einsum("bshd,bthd->bsht", q_full, k) * SOFTMAX_SCALE
    scores = scores + mask[None, :, None, :]
    scores = jax.nn.softmax(scores, axis=-1)
    o = jnp.einsum("bsht,bthd->bshd", scores, v).reshape(bsz, seqlen, -1)
    x = x + o @ p["wo"]
    h = rms(x, p["ffn_norm"][0])
    h1 = h @ p["w1"]
    ffn = ((h1 * jax.nn.sigmoid(h1)) * (h @ p["w3"])) @ p["w2"]
    return x + ffn


# TODO(synk): the MoE path (layer_id >= n_dense_layers) with CPU-offloaded
# experts, torch_npu prefetch streams and hit/miss bookkeeping has no Pallas
# equivalent and is not translated; this script implements the dense-MLP Block.
# TODO(synk): for realistic sequence lengths, attention should be restructured
# as a q-tile x kv-tile flash-style grid with online softmax (O(T*d) VMEM).

# ---------------------------------- main --------------------------------------
if __name__ == "__main__":
    key = jax.random.PRNGKey(0)
    pkey, xkey = jax.random.split(key)
    params = init_params(pkey)
    fparams = fuse_params(params)

    x = jax.random.normal(xkey, (B, S, DIM), jnp.float32)
    cos128, sin128, cos, sin = rope_tables(START_POS, S)
    causal = jnp.where(jnp.arange(S)[None, :] <= jnp.arange(S)[:, None],
                       0.0, NEG_INF).astype(jnp.float32)

    out = jax.jit(block_forward)(fparams, x, cos128, sin128)
    out = jax.block_until_ready(out)

    ref = ref_block(params, x, cos, sin, causal)
    assert out.shape == (B, S, DIM)
    max_err = float(jnp.max(jnp.abs(out - ref)))
    # bf16 MXU inputs with f32 accumulation -> expect ~1e-3 abs error vs f32 ref
    assert jnp.allclose(out, ref, atol=2e-2, rtol=2e-2), max_err

    print("KERNEL_OK")
</pallas_src>

<mosaic_0001>
module attributes {stable_mosaic.version = 11 : i64} {
  func.func @_block_kernel(%arg0: i32, %arg1: memref<8x64xf32, #tpu.memory_space<vmem>>, %arg2: memref<8x128xf32, #tpu.memory_space<vmem>>, %arg3: memref<8x128xf32, #tpu.memory_space<vmem>>, %arg4: memref<1x64xf32, #tpu.memory_space<vmem>>, %arg5: memref<1x32xf32, #tpu.memory_space<vmem>>, %arg6: memref<1x64xf32, #tpu.memory_space<vmem>>, %arg7: memref<64x544xbf16, #tpu.memory_space<vmem>>, %arg8: memref<32x192xbf16, #tpu.memory_space<vmem>>, %arg9: memref<64x64xbf16, #tpu.memory_space<vmem>>, %arg10: memref<64x256xbf16, #tpu.memory_space<vmem>>, %arg11: memref<128x64xbf16, #tpu.memory_space<vmem>>, %arg12: memref<8x64xf32, #tpu.memory_space<vmem>>) attributes {dimension_semantics = [#tpu.dimension_semantics<parallel>], iteration_bounds = array<i64: 2>, scalar_prefetch = 0 : i64, scratch_operands = 0 : i64, tpu.core_type = #tpu.core_type<tc>, window_params = [{transform_indices = @transform_0, window_bounds = array<i64: 8, 64>}, {pipeline_mode = #tpu.pipeline_mode<synchronous>, transform_indices = @transform_1, window_bounds = array<i64: 8, 128>}, {pipeline_mode = #tpu.pipeline_mode<synchronous>, transform_indices = @transform_2, window_bounds = array<i64: 8, 128>}, {pipeline_mode = #tpu.pipeline_mode<synchronous>, transform_indices = @transform_3, window_bounds = array<i64: 1, 64>}, {pipeline_mode = #tpu.pipeline_mode<synchronous>, transform_indices = @transform_4, window_bounds = array<i64: 1, 32>}, {pipeline_mode = #tpu.pipeline_mode<synchronous>, transform_indices = @transform_5, window_bounds = array<i64: 1, 64>}, {pipeline_mode = #tpu.pipeline_mode<synchronous>, transform_indices = @transform_6, window_bounds = array<i64: 64, 544>}, {pipeline_mode = #tpu.pipeline_mode<synchronous>, transform_indices = @transform_7, window_bounds = array<i64: 32, 192>}, {pipeline_mode = #tpu.pipeline_mode<synchronous>, transform_indices = @transform_8, window_bounds = array<i64: 64, 64>}, {pipeline_mode = #tpu.pipeline_mode<synchronous>, transform_indices = @transform_9, window_bounds = array<i64: 64, 256>}, {pipeline_mode = #tpu.pipeline_mode<synchronous>, transform_indices = @transform_10, window_bounds = array<i64: 128, 64>}, {transform_indices = @transform_11, window_bounds = array<i64: 8, 64>}]} {
    %c0 = arith.constant 0 : index
    %c0_0 = arith.constant 0 : index
    %0 = vector.load %arg1[%c0, %c0_0] : memref<8x64xf32, #tpu.memory_space<vmem>>, vector<8x64xf32>
    %c0_1 = arith.constant 0 : index
    %c0_2 = arith.constant 0 : index
    %1 = vector.load %arg2[%c0_1, %c0_2] : memref<8x128xf32, #tpu.memory_space<vmem>>, vector<8x128xf32>
    %c0_3 = arith.constant 0 : index
    %c0_4 = arith.constant 0 : index
    %2 = vector.load %arg3[%c0_3, %c0_4] : memref<8x128xf32, #tpu.memory_space<vmem>>, vector<8x128xf32>
    %3 = tpu.iota {dimensions = array<i32: 0>} : vector<8x8xi32>
    %4 = tpu.iota {dimensions = array<i32: 1>} : vector<8x8xi32>
    %5 = arith.cmpi sle, %4, %3 : vector<8x8xi32>
    %cst = arith.constant 0.000000e+00 : f32
    %cst_5 = arith.constant -1.000000e+30 : f32
    %6 = vector.broadcast %cst : f32 to vector<8x8xf32>
    %7 = vector.broadcast %cst_5 : f32 to vector<8x8xf32>
    %8 = arith.select %5, %6, %7 : vector<8x8xi1>, vector<8x8xf32>
    %9 = arith.mulf %0, %0 : vector<8x64xf32>
    %cst_6 = arith.constant dense<0.000000e+00> : vector<8xf32>
    %10 = vector.multi_reduction <add>, %9, %cst_6 [1] : vector<8x64xf32> to vector<8xf32>
    %11 = vector.shape_cast %10 : vector<8xf32> to vector<8x1xf32>
    %cst_7 = arith.constant 6.400000e+01 : f32
    %12 = vector.broadcast %cst_7 : f32 to vector<8x1xf32>
    %13 = arith.divf %11, %12 : vector<8x1xf32>
    %cst_8 = arith.constant 9.99999997E-7 : f32
    %14 = vector.broadcast %cst_8 : f32 to vector<8x1xf32>
    %15 = arith.addf %13, %14 : vector<8x1xf32>
    %16 = math.rsqrt %15 : vector<8x1xf32>
    %17 = vector.broadcast %16 : vector<8x1xf32> to vector<8x64xf32>
    %18 = arith.mulf %0, %17 : vector<8x64xf32>
    %c0_9 = arith.constant 0 : index
    %c0_10 = arith.constant 0 : index
    %19 = vector.load %arg4[%c0_9, %c0_10] : memref<1x64xf32, #tpu.memory_space<vmem>>, vector<1x64xf32>
    %20 = vector.broadcast %19 : vector<1x64xf32> to vector<8x64xf32>
    %21 = arith.mulf %18, %20 : vector<8x64xf32>
    %22 = arith.truncf %21 : vector<8x64xf32> to vector<8x64xbf16>
    %c0_11 = arith.constant 0 : index
    %c0_12 = arith.constant 0 : index
    %23 = vector.load %arg7[%c0_11, %c0_12] : memref<64x544xbf16, #tpu.memory_space<vmem>>, vector<64x544xbf16>
    %cst_13 = arith.constant dense<0.000000e+00> : vector<8x544xf32>
    %24 = tpu.matmul %22, %23, %cst_13 {dimension_numbers = #tpu.dot_dimension_numbers<[1], [0], [0], [1], [0, 0, 1, 1], [], []>} : vector<8x64xbf16>, vector<64x544xbf16>, vector<8x544xf32> -> vector<8x544xf32>
    %25 = vector.extract_strided_slice %24 {offsets = [0, 0], sizes = [8, 128], strides = [1, 1]} : vector<8x544xf32> to vector<8x128xf32>
    %26 = arith.mulf %25, %1 : vector<8x128xf32>
    %27 = vector.extract_strided_slice %24 {offsets = [0, 128], sizes = [8, 128], strides = [1, 1]} : vector<8x544xf32> to vector<8x128xf32>
    %28 = arith.mulf %27, %2 : vector<8x128xf32>
    %29 = arith.addf %26, %28 : vector<8x128xf32>
    %30 = vector.extract_strided_slice %24 {offsets = [0, 256], sizes = [8, 128], strides = [1, 1]} : vector<8x544xf32> to vector<8x128xf32>
    %31 = arith.mulf %30, %1 : vector<8x128xf32>
    %32 = vector.extract_strided_slice %24 {offsets = [0, 384], sizes = [8, 128], strides = [1, 1]} : vector<8x544xf32> to vector<8x128xf32>
    %33 = arith.mulf %32, %2 : vector<8x128xf32>
    %34 = arith.addf %31, %33 : vector<8x128xf32>
    %35 = vector.extract_strided_slice %24 {offsets = [0, 512], sizes = [8, 32], strides = [1, 1]} : vector<8x544xf32> to vector<8x32xf32>
    %36 = arith.mulf %35, %35 : vector<8x32xf32>
    %cst_14 = arith.constant dense<0.000000e+00> : vector<8xf32>
    %37 = vector.multi_reduction <add>, %36, %cst_14 [1] : vector<8x32xf32> to vector<8xf32>
    %38 = vector.shape_cast %37 : vector<8xf32> to vector<8x1xf32>
    %cst_15 = arith.constant 3.200000e+01 : f32
    %39 = vector.broadcast %cst_15 : f32 to vector<8x1xf32>
    %40 = arith.divf %38, %39 : vector<8x1xf32>
    %cst_16 = arith.constant 9.99999997E-7 : f32
    %41 = vector.broadcast %cst_16 : f32 to vector<8x1xf32>
    %42 = arith.addf %40, %41 : vector<8x1xf32>
    %43 = math.rsqrt %42 : vector<8x1xf32>
    %44 = vector.broadcast %43 : vector<8x1xf32> to vector<8x32xf32>
    %45 = arith.mulf %35, %44 : vector<8x32xf32>
    %c0_17 = arith.constant 0 : index
    %c0_18 = arith.constant 0 : index
    %46 = vector.load %arg5[%c0_17, %c0_18] : memref<1x32xf32, #tpu.memory_space<vmem>>, vector<1x32xf32>
    %47 = vector.broadcast %46 : vector<1x32xf32> to vector<8x32xf32>
    %48 = arith.mulf %45, %47 : vector<8x32xf32>
    %49 = arith.truncf %48 : vector<8x32xf32> to vector<8x32xbf16>
    %c0_19 = arith.constant 0 : index
    %c0_20 = arith.constant 0 : index
    %50 = vector.load %arg8[%c0_19, %c0_20] : memref<32x192xbf16, #tpu.memory_space<vmem>>, vector<32x192xbf16>
    %cst_21 = arith.constant dense<0.000000e+00> : vector<8x192xf32>
    %51 = tpu.matmul %49, %50, %cst_21 {dimension_numbers = #tpu.dot_dimension_numbers<[1], [0], [0], [1], [0, 0, 1, 1], [], []>} : vector<8x32xbf16>, vector<32x192xbf16>, vector<8x192xf32> -> vector<8x192xf32>
    %52 = vector.extract_strided_slice %51 {offsets = [0, 0], sizes = [8, 128], strides = [1, 1]} : vector<8x192xf32> to vector<8x128xf32>
    %53 = arith.addf %52, %34 : vector<8x128xf32>
    %54 = arith.truncf %53 : vector<8x128xf32> to vector<8x128xbf16>
    %55 = vector.extract_strided_slice %51 {offsets = [0, 128], sizes = [8, 64], strides = [1, 1]} : vector<8x192xf32> to vector<8x64xf32>
    %56 = arith.truncf %55 : vector<8x64xf32> to vector<8x64xbf16>
    %57 = arith.truncf %29 : vector<8x128xf32> to vector<8x128xbf16>
    %58 = vector.extract_strided_slice %57 {offsets = [0, 0], sizes = [8, 32], strides = [1, 1]} : vector<8x128xbf16> to vector<8x32xbf16>
    %59 = vector.extract_strided_slice %54 {offsets = [0, 0], sizes = [8, 32], strides = [1, 1]} : vector<8x128xbf16> to vector<8x32xbf16>
    %cst_22 = arith.constant dense<0.000000e+00> : vector<8x8xf32>
    %60 = tpu.matmul %58, %59, %cst_22 {dimension_numbers = #tpu.dot_dimension_numbers<[1], [1], [0], [0], [0, 0, 1, 0], [], []>} : vector<8x32xbf16>, vector<8x32xbf16>, vector<8x8xf32> -> vector<8x8xf32>
    %cst_23 = arith.constant 0.204124153 : f32
    %61 = vector.broadcast %cst_23 : f32 to vector<8x8xf32>
    %62 = arith.mulf %60, %61 : vector<8x8xf32>
    %63 = arith.addf %62, %8 : vector<8x8xf32>
    %cst_24 = arith.constant dense<0xFF800000> : vector<8xf32>
    %64 = vector.multi_reduction <maximumf>, %63, %cst_24 [1] : vector<8x8xf32> to vector<8xf32>
    %65 = vector.shape_cast %64 : vector<8xf32> to vector<8x1xf32>
    %66 = vector.broadcast %65 : vector<8x1xf32> to vector<8x8xf32>
    %67 = arith.subf %63, %66 : vector<8x8xf32>
    %68 = math.exp %67 : vector<8x8xf32>
    %cst_25 = arith.constant dense<0.000000e+00> : vector<8xf32>
    %69 = vector.multi_reduction <add>, %68, %cst_25 [1] : vector<8x8xf32> to vector<8xf32>
    %70 = vector.shape_cast %69 : vector<8xf32> to vector<8x1xf32>
    %71 = tpu.reciprocal %70 {approx = true} : vector<8x1xf32> -> vector<8x1xf32>
    %72 = vector.broadcast %71 : vector<8x1xf32> to vector<8x8xf32>
    %73 = arith.mulf %68, %72 : vector<8x8xf32>
    %74 = arith.truncf %73 : vector<8x8xf32> to vector<8x8xbf16>
    %75 = vector.extract_strided_slice %56 {offsets = [0, 0], sizes = [8, 16], strides = [1, 1]} : vector<8x64xbf16> to vector<8x16xbf16>
    %cst_26 = arith.constant dense<0.000000e+00> : vector<8x16xf32>
    %76 = tpu.matmul %74, %75, %cst_26 {dimension_numbers = #tpu.dot_dimension_numbers<[1], [0], [0], [1], [0, 0, 1, 1], [], []>} : vector<8x8xbf16>, vector<8x16xbf16>, vector<8x16xf32> -> vector<8x16xf32>
    %77 = vector.extract_strided_slice %57 {offsets = [0, 32], sizes = [8, 32], strides = [1, 1]} : vector<8x128xbf16> to vector<8x32xbf16>
    %78 = vector.extract_strided_slice %54 {offsets = [0, 32], sizes = [8, 32], strides = [1, 1]} : vector<8x128xbf16> to vector<8x32xbf16>
    %cst_27 = arith.constant dense<0.000000e+00> : vector<8x8xf32>
    %79 = tpu.matmul %77, %78, %cst_27 {dimension_numbers = #tpu.dot_dimension_numbers<[1], [1], [0], [0], [0, 0, 1, 0], [], []>} : vector<8x32xbf16>, vector<8x32xbf16>, vector<8x8xf32> -> vector<8x8xf32>
    %cst_28 = arith.constant 0.204124153 : f32
    %80 = vector.broadcast %cst_28 : f32 to vector<8x8xf32>
    %81 = arith.mulf %79, %80 : vector<8x8xf32>
    %82 = arith.addf %81, %8 : vector<8x8xf32>
    %cst_29 = arith.constant dense<0xFF800000> : vector<8xf32>
    %83 = vector.multi_reduction <maximumf>, %82, %cst_29 [1] : vector<8x8xf32> to vector<8xf32>
    %84 = vector.shape_cast %83 : vector<8xf32> to vector<8x1xf32>
    %85 = vector.broadcast %84 : vector<8x1xf32> to vector<8x8xf32>
    %86 = arith.subf %82, %85 : vector<8x8xf32>
    %87 = math.exp %86 : vector<8x8xf32>
    %cst_30 = arith.constant dense<0.000000e+00> : vector<8xf32>
    %88 = vector.multi_reduction <add>, %87, %cst_30 [1] : vector<8x8xf32> to vector<8xf32>
    %89 = vector.shape_cast %88 : vector<8xf32> to vector<8x1xf32>
    %90 = tpu.reciprocal %89 {approx = true} : vector<8x1xf32> -> vector<8x1xf32>
    %91 = vector.broadcast %90 : vector<8x1xf32> to vector<8x8xf32>
    %92 = arith.mulf %87, %91 : vector<8x8xf32>
    %93 = arith.truncf %92 : vector<8x8xf32> to vector<8x8xbf16>
    %94 = vector.extract_strided_slice %56 {offsets = [0, 16], sizes = [8, 16], strides = [1, 1]} : vector<8x64xbf16> to vector<8x16xbf16>
    %cst_31 = arith.constant dense<0.000000e+00> : vector<8x16xf32>
    %95 = tpu.matmul %93, %94, %cst_31 {dimension_numbers = #tpu.dot_dimension_numbers<[1], [0], [0], [1], [0, 0, 1, 1], [], []>} : vector<8x8xbf16>, vector<8x16xbf16>, vector<8x16xf32> -> vector<8x16xf32>
    %96 = vector.extract_strided_slice %57 {offsets = [0, 64], sizes = [8, 32], strides = [1, 1]} : vector<8x128xbf16> to vector<8x32xbf16>
    %97 = vector.extract_strided_slice %54 {offsets = [0, 64], sizes = [8, 32], strides = [1, 1]} : vector<8x128xbf16> to vector<8x32xbf16>
    %cst_32 = arith.constant dense<0.000000e+00> : vector<8x8xf32>
    %98 = tpu.matmul %96, %97, %cst_32 {dimension_numbers = #tpu.dot_dimension_numbers<[1], [1], [0], [0], [0, 0, 1, 0], [], []>} : vector<8x32xbf16>, vector<8x32xbf16>, vector<8x8xf32> -> vector<8x8xf32>
    %cst_33 = arith.constant 0.204124153 : f32
    %99 = vector.broadcast %cst_33 : f32 to vector<8x8xf32>
    %100 = arith.mulf %98, %99 : vector<8x8xf32>
    %101 = arith.addf %100, %8 : vector<8x8xf32>
    %cst_34 = arith.constant dense<0xFF800000> : vector<8xf32>
    %102 = vector.multi_reduction <maximumf>, %101, %cst_34 [1] : vector<8x8xf32> to vector<8xf32>
    %103 = vector.shape_cast %102 : vector<8xf32> to vector<8x1xf32>
    %104 = vector.broadcast %103 : vector<8x1xf32> to vector<8x8xf32>
    %105 = arith.subf %101, %104 : vector<8x8xf32>
    %106 = math.exp %105 : vector<8x8xf32>
    %cst_35 = arith.constant dense<0.000000e+00> : vector<8xf32>
    %107 = vector.multi_reduction <add>, %106, %cst_35 [1] : vector<8x8xf32> to vector<8xf32>
    %108 = vector.shape_cast %107 : vector<8xf32> to vector<8x1xf32>
    %109 = tpu.reciprocal %108 {approx = true} : vector<8x1xf32> -> vector<8x1xf32>
    %110 = vector.broadcast %109 : vector<8x1xf32> to vector<8x8xf32>
    %111 = arith.mulf %106, %110 : vector<8x8xf32>
    %112 = arith.truncf %111 : vector<8x8xf32> to vector<8x8xbf16>
    %113 = vector.extract_strided_slice %56 {offsets = [0, 32], sizes = [8, 16], strides = [1, 1]} : vector<8x64xbf16> to vector<8x16xbf16>
    %cst_36 = arith.constant dense<0.000000e+00> : vector<8x16xf32>
    %114 = tpu.matmul %112, %113, %cst_36 {dimension_numbers = #tpu.dot_dimension_numbers<[1], [0], [0], [1], [0, 0, 1, 1], [], []>} : vector<8x8xbf16>, vector<8x16xbf16>, vector<8x16xf32> -> vector<8x16xf32>
    %115 = vector.extract_strided_slice %57 {offsets = [0, 96], sizes = [8, 32], strides = [1, 1]} : vector<8x128xbf16> to vector<8x32xbf16>
    %116 = vector.extract_strided_slice %54 {offsets = [0, 96], sizes = [8, 32], strides = [1, 1]} : vector<8x128xbf16> to vector<8x32xbf16>
    %cst_37 = arith.constant dense<0.000000e+00> : vector<8x8xf32>
    %117 = tpu.matmul %115, %116, %cst_37 {dimension_numbers = #tpu.dot_dimension_numbers<[1], [1], [0], [0], [0, 0, 1, 0], [], []>} : vector<8x32xbf16>, vector<8x32xbf16>, vector<8x8xf32> -> vector<8x8xf32>
    %cst_38 = arith.constant 0.204124153 : f32
    %118 = vector.broadcast %cst_38 : f32 to vector<8x8xf32>
    %119 = arith.mulf %117, %118 : vector<8x8xf32>
    %120 = arith.addf %119, %8 : vector<8x8xf32>
    %cst_39 = arith.constant dense<0xFF800000> : vector<8xf32>
    %121 = vector.multi_reduction <maximumf>, %120, %cst_39 [1] : vector<8x8xf32> to vector<8xf32>
    %122 = vector.shape_cast %121 : vector<8xf32> to vector<8x1xf32>
    %123 = vector.broadcast %122 : vector<8x1xf32> to vector<8x8xf32>
    %124 = arith.subf %120, %123 : vector<8x8xf32>
    %125 = math.exp %124 : vector<8x8xf32>
    %cst_40 = arith.constant dense<0.000000e+00> : vector<8xf32>
    %126 = vector.multi_reduction <add>, %125, %cst_40 [1] : vector<8x8xf32> to vector<8xf32>
    %127 = vector.shape_cast %126 : vector<8xf32> to vector<8x1xf32>
    %128 = tpu.reciprocal %127 {approx = true} : vector<8x1xf32> -> vector<8x1xf32>
    %129 = vector.broadcast %128 : vector<8x1xf32> to vector<8x8xf32>
    %130 = arith.mulf %125, %129 : vector<8x8xf32>
    %131 = arith.truncf %130 : vector<8x8xf32> to vector<8x8xbf16>
    %132 = vector.extract_strided_slice %56 {offsets = [0, 48], sizes = [8, 16], strides = [1, 1]} : vector<8x64xbf16> to vector<8x16xbf16>
    %cst_41 = arith.constant dense<0.000000e+00> : vector<8x16xf32>
    %133 = tpu.matmul %131, %132, %cst_41 {dimension_numbers = #tpu.dot_dimension_numbers<[1], [0], [0], [1], [0, 0, 1, 1], [], []>} : vector<8x8xbf16>, vector<8x16xbf16>, vector<8x16xf32> -> vector<8x16xf32>
    %134 = tpu.concatenate %76, %95, %114, %133 in 1 : vector<8x16xf32>, vector<8x16xf32>, vector<8x16xf32>, vector<8x16xf32> -> vector<8x64xf32>
    %135 = arith.truncf %134 : vector<8x64xf32> to vector<8x64xbf16>
    %c0_42 = arith.constant 0 : index
    %c0_43 = arith.constant 0 : index
    %136 = vector.load %arg9[%c0_42, %c0_43] : memref<64x64xbf16, #tpu.memory_space<vmem>>, vector<64x64xbf16>
    %cst_44 = arith.constant dense<0.000000e+00> : vector<8x64xf32>
    %137 = tpu.matmul %135, %136, %cst_44 {dimension_numbers = #tpu.dot_dimension_numbers<[1], [0], [0], [1], [0, 0, 1, 1], [], []>} : vector<8x64xbf16>, vector<64x64xbf16>, vector<8x64xf32> -> vector<8x64xf32>
    %138 = arith.addf %0, %137 : vector<8x64xf32>
    %139 = arith.mulf %138, %138 : vector<8x64xf32>
    %cst_45 = arith.constant dense<0.000000e+00> : vector<8xf32>
    %140 = vector.multi_reduction <add>, %139, %cst_45 [1] : vector<8x64xf32> to vector<8xf32>
    %141 = vector.shape_cast %140 : vector<8xf32> to vector<8x1xf32>
    %cst_46 = arith.constant 6.400000e+01 : f32
    %142 = vector.broadcast %cst_46 : f32 to vector<8x1xf32>
    %143 = arith.divf %141, %142 : vector<8x1xf32>
    %cst_47 = arith.constant 9.99999997E-7 : f32
    %144 = vector.broadcast %cst_47 : f32 to vector<8x1xf32>
    %145 = arith.addf %143, %144 : vector<8x1xf32>
    %146 = math.rsqrt %145 : vector<8x1xf32>
    %147 = vector.broadcast %146 : vector<8x1xf32> to vector<8x64xf32>
    %148 = arith.mulf %138, %147 : vector<8x64xf32>
    %c0_48 = arith.constant 0 : index
    %c0_49 = arith.constant 0 : index
    %149 = vector.load %arg6[%c0_48, %c0_49] : memref<1x64xf32, #tpu.memory_space<vmem>>, vector<1x64xf32>
    %150 = vector.broadcast %149 : vector<1x64xf32> to vector<8x64xf32>
    %151 = arith.mulf %148, %150 : vector<8x64xf32>
    %152 = arith.truncf %151 : vector<8x64xf32> to vector<8x64xbf16>
    %c0_50 = arith.constant 0 : index
    %c0_51 = arith.constant 0 : index
    %153 = vector.load %arg10[%c0_50, %c0_51] : memref<64x256xbf16, #tpu.memory_space<vmem>>, vector<64x256xbf16>
    %cst_52 = arith.constant dense<0.000000e+00> : vector<8x256xf32>
    %154 = tpu.matmul %152, %153, %cst_52 {dimension_numbers = #tpu.dot_dimension_numbers<[1], [0], [0], [1], [0, 0, 1, 1], [], []>} : vector<8x64xbf16>, vector<64x256xbf16>, vector<8x256xf32> -> vector<8x256xf32>
    %155 = vector.extract_strided_slice %154 {offsets = [0, 0], sizes = [8, 128], strides = [1, 1]} : vector<8x256xf32> to vector<8x128xf32>
    %156 = vector.extract_strided_slice %154 {offsets = [0, 128], sizes = [8, 128], strides = [1, 1]} : vector<8x256xf32> to vector<8x128xf32>
    %157 = arith.negf %155 : vector<8x128xf32>
    %158 = math.exp %157 : vector<8x128xf32>
    %cst_53 = arith.constant 1.000000e+00 : f32
    %159 = vector.broadcast %cst_53 : f32 to vector<8x128xf32>
    %160 = arith.addf %159, %158 : vector<8x128xf32>
    %161 = arith.divf %159, %160 : vector<8x128xf32>
    %162 = arith.mulf %155, %161 : vector<8x128xf32>
    %163 = arith.mulf %162, %156 : vector<8x128xf32>
    %164 = arith.truncf %163 : vector<8x128xf32> to vector<8x128xbf16>
    %c0_54 = arith.constant 0 : index
    %c0_55 = arith.constant 0 : index
    %165 = vector.load %arg11[%c0_54, %c0_55] : memref<128x64xbf16, #tpu.memory_space<vmem>>, vector<128x64xbf16>
    %cst_56 = arith.constant dense<0.000000e+00> : vector<8x64xf32>
    %166 = tpu.matmul %164, %165, %cst_56 {dimension_numbers = #tpu.dot_dimension_numbers<[1], [0], [0], [1], [0, 0, 1, 1], [], []>} : vector<8x128xbf16>, vector<128x64xbf16>, vector<8x64xf32> -> vector<8x64xf32>
    %167 = arith.addf %138, %166 : vector<8x64xf32>
    %c0_57 = arith.constant 0 : index
    %c0_58 = arith.constant 0 : index
    %168 = vector.load %arg12[%c0_57, %c0_58] : memref<8x64xf32, #tpu.memory_space<vmem>>, vector<8x64xf32>
    tpu.vector_store %arg12[%c0_57, %c0_58], %167 {strides = array<i32>} : memref<8x64xf32, #tpu.memory_space<vmem>>, vector<8x64xf32>,
    return
  }
  func.func @transform_0(%arg0: i32) -> (i32, i32) {
    %c0_i32 = arith.constant 0 : i32
    %c0_i32_0 = arith.constant 0 : i32
    return %arg0, %c0_i32 : i32, i32
  }
  func.func @transform_1(%arg0: i32) -> (i32, i32) {
    %c0_i32 = arith.constant 0 : i32
    %c0_i32_0 = arith.constant 0 : i32
    %c0_i32_1 = arith.constant 0 : i32
    return %c0_i32, %c0_i32_0 : i32, i32
  }
  func.func @transform_2(%arg0: i32) -> (i32, i32) {
    %c0_i32 = arith.constant 0 : i32
    %c0_i32_0 = arith.constant 0 : i32
    %c0_i32_1 = arith.constant 0 : i32
    return %c0_i32, %c0_i32_0 : i32, i32
  }
  func.func @transform_3(%arg0: i32) -> (i32, i32) {
    %c0_i32 = arith.constant 0 : i32
    %c0_i32_0 = arith.constant 0 : i32
    %c0_i32_1 = arith.constant 0 : i32
    return %c0_i32, %c0_i32_0 : i32, i32
  }
  func.func @transform_4(%arg0: i32) -> (i32, i32) {
    %c0_i32 = arith.constant 0 : i32
    %c0_i32_0 = arith.constant 0 : i32
    %c0_i32_1 = arith.constant 0 : i32
    return %c0_i32, %c0_i32_0 : i32, i32
  }
  func.func @transform_5(%arg0: i32) -> (i32, i32) {
    %c0_i32 = arith.constant 0 : i32
    %c0_i32_0 = arith.constant 0 : i32
    %c0_i32_1 = arith.constant 0 : i32
    return %c0_i32, %c0_i32_0 : i32, i32
  }
  func.func @transform_6(%arg0: i32) -> (i32, i32) {
    %c0_i32 = arith.constant 0 : i32
    %c0_i32_0 = arith.constant 0 : i32
    %c0_i32_1 = arith.constant 0 : i32
    return %c0_i32, %c0_i32_0 : i32, i32
  }
  func.func @transform_7(%arg0: i32) -> (i32, i32) {
    %c0_i32 = arith.constant 0 : i32
    %c0_i32_0 = arith.constant 0 : i32
    %c0_i32_1 = arith.constant 0 : i32
    return %c0_i32, %c0_i32_0 : i32, i32
  }
  func.func @transform_8(%arg0: i32) -> (i32, i32) {
    %c0_i32 = arith.constant 0 : i32
    %c0_i32_0 = arith.constant 0 : i32
    %c0_i32_1 = arith.constant 0 : i32
    return %c0_i32, %c0_i32_0 : i32, i32
  }
  func.func @transform_9(%arg0: i32) -> (i32, i32) {
    %c0_i32 = arith.constant 0 : i32
    %c0_i32_0 = arith.constant 0 : i32
    %c0_i32_1 = arith.constant 0 : i32
    return %c0_i32, %c0_i32_0 : i32, i32
  }
  func.func @transform_10(%arg0: i32) -> (i32, i32) {
    %c0_i32 = arith.constant 0 : i32
    %c0_i32_0 = arith.constant 0 : i32
    %c0_i32_1 = arith.constant 0 : i32
    return %c0_i32, %c0_i32_0 : i32, i32
  }
  func.func @transform_11(%arg0: i32) -> (i32, i32) {
    %c0_i32 = arith.constant 0 : i32
    %c0_i32_0 = arith.constant 0 : i32
    return %arg0, %c0_i32 : i32, i32
  }
}

</mosaic_0001>

<llo_original>
// kernel: block_forward.1
$region0: #{block_forward.1}
  #allocation0 [shape = 'u32[]', space=smem, size = 0x4, offset = 0x4, fixed_abs, tag = 'smem constant byte address 0x4 - core index']
  #allocation1 [shape = 'u32[144,128]{1,0:T(1,128)}', space=vmem, size = 0x12000, scoped, tag = 'internal scratch']
  %s0 = inlined_call_operand.vmem [shape: f32[16,64], index: 0, kind: input, shape index: {}]
  %s1 = inlined_call_operand.hbm [shape: f32[8,128], index: 1, kind: input, shape index: {}]
  %s2 = inlined_call_operand.hbm [shape: f32[8,128], index: 2, kind: input, shape index: {}]
  %s3 = inlined_call_operand.hbm [shape: f32[1,64], index: 3, kind: input, shape index: {}]
  %s4 = inlined_call_operand.hbm [shape: f32[1,32], index: 4, kind: input, shape index: {}]
  %s5 = inlined_call_operand.hbm [shape: f32[1,64], index: 5, kind: input, shape index: {}]
  %s6 = inlined_call_operand.hbm [shape: bf16[64,544], index: 6, kind: input, shape index: {}]
  %s7 = inlined_call_operand.vmem [shape: bf16[32,192], index: 7, kind: input, shape index: {}]
  %s8 = inlined_call_operand.hbm [shape: bf16[64,64], index: 8, kind: input, shape index: {}]
  %s9 = inlined_call_operand.vmem [shape: bf16[64,256], index: 9, kind: input, shape index: {}]
  %s10 = inlined_call_operand.vmem [shape: bf16[128,64], index: 10, kind: input, shape index: {}]
  %s11 = inlined_call_operand.hbm [shape: f32[16,64], index: 11, kind: output, shape index: {}]
  %s12 = sld [smem:[#allocation0]]
  $region105: #{block_forward.1} parent=0
    _
  %s14 = ssub.s32 1, %s12
  %s15 = scalar_select 0, %s14, %s12
  $region1: #{block_forward.1} parent=0
    #allocation2 [shape = 'u8[4096]{0}', space=vmem, size = 0x1000, scoped, tag = 'input window, operand 1, single buffered']
    #allocation3 [shape = 's32[2]{0}', space=sflag, size = 0x8, scoped, tag = 'scoped memory for block_forward.1']
    #allocation4 [shape = 's32[2]{0}', space=sflag, size = 0x8, scoped, tag = 'scoped memory for block_forward.1']
    #allocation5 [shape = 'u8[4096]{0}', space=vmem, size = 0x1000, scoped, tag = 'input window, operand 2, single buffered']
    #allocation6 [shape = 's32[1]{0}', space=sflag, size = 0x4, scoped, tag = 'scoped memory for block_forward.1']
    #allocation7 [shape = 'u8[512]{0}', space=vmem, size = 0x400, scoped, tag = 'input window, operand 3, single buffered']
    #allocation8 [shape = 'u8[512]{0}', space=vmem, size = 0x400, scoped, tag = 'input window, operand 4, single buffered']
    #allocation9 [shape = 's32[1]{0}', space=sflag, size = 0x4, scoped, tag = 'scoped memory for block_forward.1']
    #allocation10 [shape = 'u8[512]{0}', space=vmem, size = 0x400, scoped, tag = 'input window, operand 5, single buffered']
    #allocation11 [shape = 'u8[81920]{0}', space=vmem, size = 0x14000, scoped, tag = 'input window, operand 6, single buffered']
    #allocation12 [shape = 's32[1]{0}', space=sflag, size = 0x4, scoped, tag = 'scoped memory for block_forward.1']
    #allocation13 [shape = 'u8[16384]{0}', space=vmem, size = 0x4000, scoped, tag = 'input window, operand 8, single buffered']
    #allocation14 [shape = 'u8[8192]{0}', space=vmem, size = 0x2000, scoped, tag = 'output window, operand 0']
    %16 = vsyncpa [#allocation3], 0
    %17 = vsyncpa [#allocation6], 0
    %18 = vsyncpa [#allocation9], 0
    %19 = vsyncpa [#allocation12], 0
    %20 = vsyncpa [#allocation4], 0
    %s21 = scalar_lea.sflag [#allocation4], 1
    %22 = vsyncpa %s21, 0
    loop: start=0, step=1, limit=4
    $region2: #{block_forward.1} parent=1 // loop_pre_header
      _
    $region3: #{block_forward.1} parent=1 // loop_header
      %s24 = sphi 0, %s28
      %p25 = scmp.ge.s32.totalorder %s24, 4
      %s34 = sphi 0, %s36
      %s37 = sphi 0, %s34
      %s38 = sphi 0, %s37
      %s54 = sphi 0, %s38
      %s58 = sphi 0, %s58
      %s60 = sphi 0, %s58
      %s61 = sphi 0, %s60
      %s75 = sphi 0, %s61
      %s79 = sphi 0, %s79
      %s81 = sphi 0, %s79
      %s82 = sphi 0, %s81
      %s96 = sphi 0, %s82
      %s100 = sphi 0, %s100
      %s102 = sphi 0, %s100
      %s103 = sphi 0, %s102
      %s117 = sphi 0, %s103
      %s121 = sphi 0, %s121
      %s123 = sphi 0, %s121
      %s124 = sphi 0, %s123
      %s138 = sphi 0, %s124
      %s142 = sphi 0, %s142
      %s144 = sphi 0, %s142
      %s145 = sphi 0, %s144
      %s159 = sphi 0, %s145
      %s163 = sphi 0, %s163
      %s165 = sphi 0, %s163
      %s166 = sphi 0, %s165
      %s180 = sphi 0, %s166
      %s184 = sphi 0, %s184
      %s186 = sphi 0, %s184
      %s187 = sphi 0, %s186
      %s201 = sphi 0, %s187
      %s205 = sphi 0, %s205
      %s207 = sphi 0, %s205
      %s208 = sphi 0, %s207
      %s222 = sphi 0, %s208
      %s226 = sphi 0, %s226
      %s228 = sphi 0, %s226
      %s229 = sphi 0, %s228
      %s243 = sphi 0, %s229
      %s247 = sphi 0, %s247
      %s249 = sphi 0, %s247
      %s250 = sphi 0, %s249
      %s264 = sphi 0, %s250
      %s270 = sphi 0, %s272
      %s273 = sphi 0, %s270
      %s274 = sphi 0, %s273
      %s290 = sphi 0, %s274
    $region4: #{block_forward.1} parent=1 // loop_header_branch
      %27 = sbr.rel (%p25) target = $region8
    $region5: #{block_forward.1} parent=1 // loop_body
      %s29 = ssub.s32 %s24, 1
      %s30 = ssub.s32 %s24, 2
      %s31 = sadd.s32 %s24, 1
      %s32 = ssub.s32 %s24, %s31
      %p33 = scmp.eq.s32.totalorder %s32, 0
      %s35 = sadd.s32 %s34, 1
      %s36 = scalar_select %p33, %s34, %s35
      %p39 = pneg %p33
      %p40 = scmp.eq.s32.totalorder %s24, 1
      %p41 = por %p39, %p40
      %p42 = scmp.ne.s32.totalorder %s34, %s37
      %p43 = scmp.eq.s32.totalorder %s24, 0
      %p44 = por %p42, %p43
      %p45 = scmp.ne.s32.totalorder %s34, %s37
      %p46 = scmp.eq.s32.totalorder %s29, 1
      %p47 = por %p45, %p46
      %p48 = scmp.ne.s32.totalorder %s37, %s38
      %p49 = scmp.eq.s32.totalorder %s29, 0
      %p50 = por %p48, %p49
      %p51 = scmp.ne.s32.totalorder %s37, %s38
      %p52 = scmp.eq.s32.totalorder %s30, 1
      %p53 = por %p51, %p52
      %p55 = scmp.ne.s32.totalorder %s38, %s54
      %p56 = scmp.eq.s32.totalorder %s30, 0
      %p57 = por %p55, %p56
      %s59 = sadd.s32 %s58, 1
      %p62 = scmp.eq.s32.totalorder %s24, 1
      %p63 = scmp.ne.s32.totalorder %s58, %s60
      %p64 = scmp.eq.s32.totalorder %s24, 0
      %p65 = por %p63, %p64
      %p66 = scmp.ne.s32.totalorder %s58, %s60
      %p67 = scmp.eq.s32.totalorder %s29, 1
      %p68 = por %p66, %p67
      %p69 = scmp.ne.s32.totalorder %s60, %s61
      %p70 = scmp.eq.s32.totalorder %s29, 0
      %p71 = por %p69, %p70
      %p72 = scmp.ne.s32.totalorder %s60, %s61
      %p73 = scmp.eq.s32.totalorder %s30, 1
      %p74 = por %p72, %p73
      %p76 = scmp.ne.s32.totalorder %s61, %s75
      %p77 = scmp.eq.s32.totalorder %s30, 0
      %p78 = por %p76, %p77
      %s80 = sadd.s32 %s79, 1
      %p83 = scmp.eq.s32.totalorder %s24, 1
      %p84 = scmp.ne.s32.totalorder %s79, %s81
      %p85 = scmp.eq.s32.totalorder %s24, 0
      %p86 = por %p84, %p85
      %p87 = scmp.ne.s32.totalorder %s79, %s81
      %p88 = scmp.eq.s32.totalorder %s29, 1
      %p89 = por %p87, %p88
      %p90 = scmp.ne.s32.totalorder %s81, %s82
      %p91 = scmp.eq.s32.totalorder %s29, 0
      %p92 = por %p90, %p91
      %p93 = scmp.ne.s32.totalorder %s81, %s82
      %p94 = scmp.eq.s32.totalorder %s30, 1
      %p95 = por %p93, %p94
      %p97 = scmp.ne.s32.totalorder %s82, %s96
      %p98 = scmp.eq.s32.totalorder %s30, 0
      %p99 = por %p97, %p98
      %s101 = sadd.s32 %s100, 1
      %p104 = scmp.eq.s32.totalorder %s24, 1
      %p105 = scmp.ne.s32.totalorder %s100, %s102
      %p106 = scmp.eq.s32.totalorder %s24, 0
      %p107 = por %p105, %p106
      %p108 = scmp.ne.s32.totalorder %s100, %s102
      %p109 = scmp.eq.s32.totalorder %s29, 1
      %p110 = por %p108, %p109
      %p111 = scmp.ne.s32.totalorder %s102, %s103
      %p112 = scmp.eq.s32.totalorder %s29, 0
      %p113 = por %p111, %p112
      %p114 = scmp.ne.s32.totalorder %s102, %s103
      %p115 = scmp.eq.s32.totalorder %s30, 1
      %p116 = por %p114, %p115
      %p118 = scmp.ne.s32.totalorder %s103, %s117
      %p119 = scmp.eq.s32.totalorder %s30, 0
      %p120 = por %p118, %p119
      %s122 = sadd.s32 %s121, 1
      %p125 = scmp.eq.s32.totalorder %s24, 1
      %p126 = scmp.ne.s32.totalorder %s121, %s123
      %p127 = scmp.eq.s32.totalorder %s24, 0
      %p128 = por %p126, %p127
      %p129 = scmp.ne.s32.totalorder %s121, %s123
      %p130 = scmp.eq.s32.totalorder %s29, 1
      %p131 = por %p129, %p130
      %p132 = scmp.ne.s32.totalorder %s123, %s124
      %p133 = scmp.eq.s32.totalorder %s29, 0
      %p134 = por %p132, %p133
      %p135 = scmp.ne.s32.totalorder %s123, %s124
      %p136 = scmp.eq.s32.totalorder %s30, 1
      %p137 = por %p135, %p136
      %p139 = scmp.ne.s32.totalorder %s124, %s138
      %p140 = scmp.eq.s32.totalorder %s30, 0
      %p141 = por %p139, %p140
      %s143 = sadd.s32 %s142, 1
      %p146 = scmp.eq.s32.totalorder %s24, 1
      %p147 = scmp.ne.s32.totalorder %s142, %s144
      %p148 = scmp.eq.s32.totalorder %s24, 0
      %p149 = por %p147, %p148
      %p150 = scmp.ne.s32.totalorder %s142, %s144
      %p151 = scmp.eq.s32.totalorder %s29, 1
      %p152 = por %p150, %p151
      %p153 = scmp.ne.s32.totalorder %s144, %s145
      %p154 = scmp.eq.s32.totalorder %s29, 0
      %p155 = por %p153, %p154
      %p156 = scmp.ne.s32.totalorder %s144, %s145
      %p157 = scmp.eq.s32.totalorder %s30, 1
      %p158 = por %p156, %p157
      %p160 = scmp.ne.s32.totalorder %s145, %s159
      %p161 = scmp.eq.s32.totalorder %s30, 0
      %p162 = por %p160, %p161
      %s164 = sadd.s32 %s163, 1
      %p167 = scmp.eq.s32.totalorder %s24, 1
      %p168 = scmp.ne.s32.totalorder %s163, %s165
      %p169 = scmp.eq.s32.totalorder %s24, 0
      %p170 = por %p168, %p169
      %p171 = scmp.ne.s32.totalorder %s163, %s165
      %p172 = scmp.eq.s32.totalorder %s29, 1
      %p173 = por %p171, %p172
      %p174 = scmp.ne.s32.totalorder %s165, %s166
      %p175 = scmp.eq.s32.totalorder %s29, 0
      %p176 = por %p174, %p175
      %p177 = scmp.ne.s32.totalorder %s165, %s166
      %p178 = scmp.eq.s32.totalorder %s30, 1
      %p179 = por %p177, %p178
      %p181 = scmp.ne.s32.totalorder %s166, %s180
      %p182 = scmp.eq.s32.totalorder %s30, 0
      %p183 = por %p181, %p182
      %s185 = sadd.s32 %s184, 1
      %p188 = scmp.eq.s32.totalorder %s24, 1
      %p189 = scmp.ne.s32.totalorder %s184, %s186
      %p190 = scmp.eq.s32.totalorder %s24, 0
      %p191 = por %p189, %p190
      %p192 = scmp.ne.s32.totalorder %s184, %s186
      %p193 = scmp.eq.s32.totalorder %s29, 1
      %p194 = por %p192, %p193
      %p195 = scmp.ne.s32.totalorder %s186, %s187
      %p196 = scmp.eq.s32.totalorder %s29, 0
      %p197 = por %p195, %p196
      %p198 = scmp.ne.s32.totalorder %s186, %s187
      %p199 = scmp.eq.s32.totalorder %s30, 1
      %p200 = por %p198, %p199
      %p202 = scmp.ne.s32.totalorder %s187, %s201
      %p203 = scmp.eq.s32.totalorder %s30, 0
      %p204 = por %p202, %p203
      %s206 = sadd.s32 %s205, 1
      %p209 = scmp.eq.s32.totalorder %s24, 1
      %p210 = scmp.ne.s32.totalorder %s205, %s207
      %p211 = scmp.eq.s32.totalorder %s24, 0
      %p212 = por %p210, %p211
      %p213 = scmp.ne.s32.totalorder %s205, %s207
      %p214 = scmp.eq.s32.totalorder %s29, 1
      %p215 = por %p213, %p214
      %p216 = scmp.ne.s32.totalorder %s207, %s208
      %p217 = scmp.eq.s32.totalorder %s29, 0
      %p218 = por %p216, %p217
      %p219 = scmp.ne.s32.totalorder %s207, %s208
      %p220 = scmp.eq.s32.totalorder %s30, 1
      %p221 = por %p219, %p220
      %p223 = scmp.ne.s32.totalorder %s208, %s222
      %p224 = scmp.eq.s32.totalorder %s30, 0
      %p225 = por %p223, %p224
      %s227 = sadd.s32 %s226, 1
      %p230 = scmp.eq.s32.totalorder %s24, 1
      %p231 = scmp.ne.s32.totalorder %s226, %s228
      %p232 = scmp.eq.s32.totalorder %s24, 0
      %p233 = por %p231, %p232
      %p234 = scmp.ne.s32.totalorder %s226, %s228
      %p235 = scmp.eq.s32.totalorder %s29, 1
      %p236 = por %p234, %p235
      %p237 = scmp.ne.s32.totalorder %s228, %s229
      %p238 = scmp.eq.s32.totalorder %s29, 0
      %p239 = por %p237, %p238
      %p240 = scmp.ne.s32.totalorder %s228, %s229
      %p241 = scmp.eq.s32.totalorder %s30, 1
      %p242 = por %p240, %p241
      %p244 = scmp.ne.s32.totalorder %s229, %s243
      %p245 = scmp.eq.s32.totalorder %s30, 0
      %p246 = por %p244, %p245
      %s248 = sadd.s32 %s247, 1
      %p251 = scmp.eq.s32.totalorder %s24, 1
      %p252 = scmp.ne.s32.totalorder %s247, %s249
      %p253 = scmp.eq.s32.totalorder %s24, 0
      %p254 = por %p252, %p253
      %p255 = scmp.ne.s32.totalorder %s247, %s249
      %p256 = scmp.eq.s32.totalorder %s29, 1
      %p257 = por %p255, %p256
      %p258 = scmp.ne.s32.totalorder %s249, %s250
      %p259 = scmp.eq.s32.totalorder %s29, 0
      %p260 = por %p258, %p259
      %p261 = scmp.ne.s32.totalorder %s249, %s250
      %p262 = scmp.eq.s32.totalorder %s30, 1
      %p263 = por %p261, %p262
      %p265 = scmp.ne.s32.totalorder %s250, %s264
      %p266 = scmp.eq.s32.totalorder %s30, 0
      %p267 = por %p265, %p266
      %s268 = ssub.s32 %s24, %s31
      %p269 = scmp.eq.s32.totalorder %s268, 0
      %s271 = sadd.s32 %s270, 1
      %s272 = scalar_select %p269, %s270, %s271
      %p275 = pneg %p269
      %p276 = scmp.eq.s32.totalorder %s24, 1
      %p277 = por %p275, %p276
      %p278 = scmp.ne.s32.totalorder %s270, %s273
      %p279 = scmp.eq.s32.totalorder %s24, 0
      %p280 = por %p278, %p279
      %p281 = scmp.ne.s32.totalorder %s270, %s273
      %p282 = scmp.eq.s32.totalorder %s29, 1
      %p283 = por %p281, %p282
      %p284 = scmp.ne.s32.totalorder %s273, %s274
      %p285 = scmp.eq.s32.totalorder %s29, 0
      %p286 = por %p284, %p285
      %p287 = scmp.ne.s32.totalorder %s273, %s274
      %p288 = scmp.eq.s32.totalorder %s30, 1
      %p289 = por %p287, %p288
      %p291 = scmp.ne.s32.totalorder %s274, %s290
      %p292 = scmp.eq.s32.totalorder %s30, 0
      %p293 = por %p291, %p292
      %p294 = scmp.le.s32.totalorder 1, %s24
      %p295 = scmp.lt.s32.totalorder %s24, 3
      %p296 = pnand %p294, %p295
      %p297 = pneg %p296
      // Predicated region
      $region9: #{block_forward.1} parent=5 // pred_check
        _
      $region10: #{block_forward.1} parent=5 // pred_check_branch
        %299 = sbr.rel (%p296) target = $region12
      $region11: #{block_forward.1} parent=5 // pred_region
        %s300 = ssub.s32 %s24, 1
        // Predicated region
        $region13: #{block_forward.1} parent=11 // pred_check
          %p301 = pneg %p71
        $region14: #{block_forward.1} parent=11 // pred_check_branch
          %303 = sbr.rel (%p301) target = $region16
        $region15: #{block_forward.1} parent=11 // pred_region
          %s305 = ssub.s32 128, 128
          %306 = vsyncadd [#allocation3], %s305
          %s308 = sshll.u32 [#allocation2], 4
          %s309 = int_to_ptr.vmem [resolvable:$true] %s308
          %311 = dma.hbm_to_vmem [thread:$0]  %s1, 128, %s309, [#allocation3]
        $region16: #{block_forward.1} parent=11 // pred_fallthru
          _
        // Predicated region
        $region17: #{block_forward.1} parent=11 // pred_check
          %p312 = pneg %p92
        $region18: #{block_forward.1} parent=11 // pred_check_branch
          %314 = sbr.rel (%p312) target = $region20
        $region19: #{block_forward.1} parent=11 // pred_region
          %s316 = ssub.s32 128, 128
          %317 = vsyncadd [#allocation6], %s316
          %s319 = sshll.u32 [#allocation5], 4
          %s320 = int_to_ptr.vmem [resolvable:$true] %s319
          %322 = dma.hbm_to_vmem [thread:$0]  %s2, 128, %s320, [#allocation6]
        $region20: #{block_forward.1} parent=11 // pred_fallthru
          _
        // Predicated region
        $region21: #{block_forward.1} parent=11 // pred_check
          %p323 = pneg %p113
        $region22: #{block_forward.1} parent=11 // pred_check_branch
          %325 = sbr.rel (%p323) target = $region24
        $region23: #{block_forward.1} parent=11 // pred_region
          %s327 = ssub.s32 16, 16
          %328 = vsyncadd [#allocation6], %s327
          %s330 = sshll.u32 [#allocation7], 4
          %s331 = int_to_ptr.vmem [resolvable:$true] %s330
          %333 = dma.hbm_to_vmem [thread:$0]  %s3, 16, %s331, [#allocation6]
        $region24: #{block_forward.1} parent=11 // pred_fallthru
          _
        // Predicated region
        $region25: #{block_forward.1} parent=11 // pred_check
          %p334 = pneg %p134
        $region26: #{block_forward.1} parent=11 // pred_check_branch
          %336 = sbr.rel (%p334) target = $region28
        $region27: #{block_forward.1} parent=11 // pred_region
          %s338 = ssub.s32 16, 16
          %339 = vsyncadd [#allocation9], %s338
          %s341 = sshll.u32 [#allocation8], 4
          %s342 = int_to_ptr.vmem [resolvable:$true] %s341
          %344 = dma.hbm_to_vmem [thread:$0]  %s4, 16, %s342, [#allocation9]
        $region28: #{block_forward.1} parent=11 // pred_fallthru
          _
        // Predicated region
        $region29: #{block_forward.1} parent=11 // pred_check
          %p345 = pneg %p155
        $region30: #{block_forward.1} parent=11 // pred_check_branch
          %347 = sbr.rel (%p345) target = $region32
        $region31: #{block_forward.1} parent=11 // pred_region
          %s349 = ssub.s32 16, 16
          %350 = vsyncadd [#allocation9], %s349
          %s352 = sshll.u32 [#allocation10], 4
          %s353 = int_to_ptr.vmem [resolvable:$true] %s352
          %355 = dma.hbm_to_vmem [thread:$0]  %s5, 16, %s353, [#allocation9]
        $region32: #{block_forward.1} parent=11 // pred_fallthru
          _
        // Predicated region
        $region33: #{block_forward.1} parent=11 // pred_check
          %p356 = pneg %p176
        $region34: #{block_forward.1} parent=11 // pred_check_branch
          %358 = sbr.rel (%p356) target = $region36
        $region35: #{block_forward.1} parent=11 // pred_region
          %s360 = ssub.s32 2560, 2560
          %361 = vsyncadd [#allocation12], %s360
          %s362 = sshll.u32 [#allocation11], 4
          %s363 = int_to_ptr.vmem [resolvable:$true] %s362
          %368 = dma.hbm_to_vmem [thread:$0]  %s6, 2560, %s363, [#allocation12], 320, 320, 20
        $region36: #{block_forward.1} parent=11 // pred_fallthru
          _
        // Predicated region
        $region37: #{block_forward.1} parent=11 // pred_check
          %p369 = pneg %p197
        $region38: #{block_forward.1} parent=11 // pred_check_branch
          %371 = sbr.rel (%p369) target = $region40
        $region39: #{block_forward.1} parent=11 // pred_region
          _
        $region40: #{block_forward.1} parent=11 // pred_fallthru
          _
        // Predicated region
        $region41: #{block_forward.1} parent=11 // pred_check
          %p372 = pneg %p218
        $region42: #{block_forward.1} parent=11 // pred_check_branch
          %374 = sbr.rel (%p372) target = $region44
        $region43: #{block_forward.1} parent=11 // pred_region
          %s376 = ssub.s32 512, 512
          %377 = vsyncadd [#allocation12], %s376
          %s378 = sshll.u32 [#allocation13], 4
          %s379 = int_to_ptr.vmem [resolvable:$true] %s378
          %384 = dma.hbm_to_vmem [thread:$0]  %s8, 512, %s379, [#allocation12], 64, 64, 4
        $region44: #{block_forward.1} parent=11 // pred_fallthru
          _
        // Predicated region
        $region45: #{block_forward.1} parent=11 // pred_check
          %p385 = pneg %p239
        $region46: #{block_forward.1} parent=11 // pred_check_branch
          %387 = sbr.rel (%p385) target = $region48
        $region47: #{block_forward.1} parent=11 // pred_region
          _
        $region48: #{block_forward.1} parent=11 // pred_fallthru
          _
        // Predicated region
        $region49: #{block_forward.1} parent=11 // pred_check
          %p388 = pneg %p260
        $region50: #{block_forward.1} parent=11 // pred_check_branch
          %390 = sbr.rel (%p388) target = $region52
        $region51: #{block_forward.1} parent=11 // pred_region
          _
        $region52: #{block_forward.1} parent=11 // pred_fallthru
          _
      $region12: #{block_forward.1} parent=5 // pred_fallthru
        _
      %p391 = scmp.lt.s32.totalorder %s24, 2
      // Predicated region
      $region53: #{block_forward.1} parent=5 // pred_check
        %p392 = pneg %p391
      $region54: #{block_forward.1} parent=5 // pred_check_branch
        %394 = sbr.rel (%p392) target = $region56
      $region55: #{block_forward.1} parent=5 // pred_region
        // Predicated region
        $region57: #{block_forward.1} parent=55 // pred_check
          %p395 = pneg %p44
        $region58: #{block_forward.1} parent=55 // pred_check_branch
          %397 = sbr.rel (%p395) target = $region60
        $region59: #{block_forward.1} parent=55 // pred_region
          %p398 = scmp.lt.s32.totalorder %s24, 1
          %s399 = scalar_select %p398, %s24, 1
          %s400 = smul.addr %s399, 8
          %s401 = scalar_lea.vmem %s0, %s400
        $region60: #{block_forward.1} parent=55 // pred_fallthru
          _
      $region56: #{block_forward.1} parent=5 // pred_fallthru
        _
      %p402 = scmp.le.s32.totalorder 1, %s24
      %p403 = scmp.lt.s32.totalorder %s24, 3
      %p404 = pnand %p402, %p403
      %p405 = pneg %p404
      // Predicated region
      $region61: #{block_forward.1} parent=5 // pred_check
        _
      $region62: #{block_forward.1} parent=5 // pred_check_branch
        %407 = sbr.rel (%p404) target = $region64
      $region63: #{block_forward.1} parent=5 // pred_region
        %s408 = ssub.s32 %s24, 1
        // Predicated region
        $region65: #{block_forward.1} parent=63 // pred_check
          %p409 = pneg %p71
        $region66: #{block_forward.1} parent=63 // pred_check_branch
          %411 = sbr.rel (%p409) target = $region68
        $region67: #{block_forward.1} parent=63 // pred_region
          %412 = dma.done [#allocation3], 128
        $region68: #{block_forward.1} parent=63 // pred_fallthru
          _
        // Predicated region
        $region69: #{block_forward.1} parent=63 // pred_check
          %p413 = pneg %p92
        $region70: #{block_forward.1} parent=63 // pred_check_branch
          %415 = sbr.rel (%p413) target = $region72
        $region71: #{block_forward.1} parent=63 // pred_region
          %416 = dma.done [#allocation6], 128
        $region72: #{block_forward.1} parent=63 // pred_fallthru
          _
        // Predicated region
        $region73: #{block_forward.1} parent=63 // pred_check
          %p417 = pneg %p113
        $region74: #{block_forward.1} parent=63 // pred_check_branch
          %419 = sbr.rel (%p417) target = $region76
        $region75: #{block_forward.1} parent=63 // pred_region
          %420 = dma.done [#allocation6], 16
        $region76: #{block_forward.1} parent=63 // pred_fallthru
          _
        // Predicated region
        $region77: #{block_forward.1} parent=63 // pred_check
          %p421 = pneg %p134
        $region78: #{block_forward.1} parent=63 // pred_check_branch
          %423 = sbr.rel (%p421) target = $region80
        $region79: #{block_forward.1} parent=63 // pred_region
          %424 = dma.done [#allocation9], 16
        $region80: #{block_forward.1} parent=63 // pred_fallthru
          _
        // Predicated region
        $region81: #{block_forward.1} parent=63 // pred_check
          %p425 = pneg %p155
        $region82: #{block_forward.1} parent=63 // pred_check_branch
          %427 = sbr.rel (%p425) target = $region84
        $region83: #{block_forward.1} parent=63 // pred_region
          %428 = dma.done [#allocation9], 16
        $region84: #{block_forward.1} parent=63 // pred_fallthru
          _
        // Predicated region
        $region85: #{block_forward.1} parent=63 // pred_check
          %p429 = pneg %p176
        $region86: #{block_forward.1} parent=63 // pred_check_branch
          %431 = sbr.rel (%p429) target = $region88
        $region87: #{block_forward.1} parent=63 // pred_region
          %432 = dma.done [#allocation12], 2560
        $region88: #{block_forward.1} parent=63 // pred_fallthru
          _
        // Predicated region
        $region89: #{block_forward.1} parent=63 // pred_check
          %p433 = pneg %p218
        $region90: #{block_forward.1} parent=63 // pred_check_branch
          %435 = sbr.rel (%p433) target = $region92
        $region91: #{block_forward.1} parent=63 // pred_region
          %436 = dma.done [#allocation12], 512
        $region92: #{block_forward.1} parent=63 // pred_fallthru
          _
        %p437 = scmp.lt.s32.totalorder %s29, 1
        %s438 = scalar_select %p437, %s29, 1
        %s439 = smul.addr %s438, 8
        %s440 = scalar_lea.vmem %s0, %s439
        %p441 = pneg %p50
        %p442 = pneg %p47
        %p443 = pneg %p71
        %p444 = pneg %p68
        %p445 = pneg %p92
        %p446 = pneg %p89
        %p447 = pneg %p113
        %p448 = pneg %p110
        %p449 = pneg %p134
        %p450 = pneg %p131
        %p451 = pneg %p155
        %p452 = pneg %p152
        %p453 = pneg %p176
        %p454 = pneg %p173
        %p455 = pneg %p197
        %p456 = pneg %p194
        %p457 = pneg %p218
        %p458 = pneg %p215
        %p459 = pneg %p239
        %p460 = pneg %p236
        %p461 = pneg %p260
        %p462 = pneg %p257
        %p463 = pneg %p286
        %p464 = pneg %p283
        %s465 = sand.u32 %s273, 1
        %s466 = scalar_lea.sflag [#allocation4], %s465
        %s467 = sand.u32 %s273, 1
        %s468 = smul.addr %s467, 8
        %s469 = scalar_lea.vmem [#allocation14], %s468
        %p470 = scmp.lt.s32.totalorder %s29, 1
        %s471 = scalar_select %p470, %s29, 1
        %s472 = smul.addr %s471, 8
        %s473 = scalar_lea.vmem %s0, %s472
        %v475 = vld [vmem:[%s473] sm:$0xff]
        %v476 = vld [vmem:[#allocation2] sm:$0xff]
        %v477 = vld [vmem:[#allocation5] sm:$0xff]
        %v478 = vlaneseq
        %v479 = vshrl.u32 %v478, 7
        %v480 = vlaneseq
        %v481 = vand.u32 %v480, 127
        %vm482 = vcmp.le.s32.totalorder %v481, %v479
        %v483 = vsel %vm482, 0.0, -1e+30
        %v484 = vmul.f32 %v475, %v475
        %vm485 = vcmask 523264
        %v486 = vsel %vm485, %v484, 0.0
        %487 = vadd.xlane.f32.xlu0 %v486
        %v488 = vpop.xlane.xlu0 %487
        %v489 = vrcp.pop 64.0
        %v490 = vmul.f32 %v488, %v489
        %v491 = vadd.f32 %v490, 1e-06
        %v492 = vrsqrt.pop %v491
        %v493 = vmul.f32 %v475, %v492
        %v494 = vld [vmem:[#allocation7] sm:$0x1]
        %v496 = vlaneseq
        %v497 = vshrl.u32 %v496, 7
        %v498 = vsub.s32 0, %v497
        %v499 = vrot.slane %v494, %v498
        %v501 = vmul.f32 %v493, %v499
        %v502 = vpack.c.bf16 %v501, %v501
        %v503 = vld [vmem:[#allocation11] sm:$0xff]
        %v504 = vld [vmem:[#allocation11 + $0x8] sm:$0xff]
        %v505 = vld [vmem:[#allocation11 + $0x10] sm:$0xf]
        %v506 = vld [vmem:[#allocation11 + $0x14] sm:$0xff]
        %v507 = vld [vmem:[#allocation11 + $0x1c] sm:$0xff]
        %v508 = vld [vmem:[#allocation11 + $0x24] sm:$0xf]
        %v509 = vld [vmem:[#allocation11 + $0x28] sm:$0xff]
        %v510 = vld [vmem:[#allocation11 + $0x30] sm:$0xff]
        %v511 = vld [vmem:[#allocation11 + $0x38] sm:$0xf]
        %v512 = vld [vmem:[#allocation11 + $0x3c] sm:$0xff]
        %v513 = vld [vmem:[#allocation11 + $0x44] sm:$0xff]
        %v514 = vld [vmem:[#allocation11 + $0x4c] sm:$0xf]
        %v515 = vld [vmem:[#allocation11 + $0x50] sm:$0xff]
        %v516 = vld [vmem:[#allocation11 + $0x58] sm:$0xff]
        %v517 = vld [vmem:[#allocation11 + $0x60] sm:$0xf]
        %v518 = vld [vmem:[#allocation11 + $0x64] sm:$0xff]
        %v519 = vld [vmem:[#allocation11 + $0x6c] sm:$0xff]
        %v520 = vld [vmem:[#allocation11 + $0x74] sm:$0xf]
        %v521 = vld [vmem:[#allocation11 + $0x78] sm:$0xff]
        %v522 = vld [vmem:[#allocation11 + $0x80] sm:$0xff]
        %v523 = vld [vmem:[#allocation11 + $0x88] sm:$0xf]
        %v524 = vld [vmem:[#allocation11 + $0x8c] sm:$0xff]
        %v525 = vld [vmem:[#allocation11 + $0x94] sm:$0xff]
        %v526 = vld [vmem:[#allocation11 + $0x9c] sm:$0xf]
        %v551 = vunpack.c.l.b16 %v503
        %v552 = vunpack.c.h.b16 %v503
        %v553 = vunpack.c.l.b16 %v504
        %v554 = vunpack.c.h.b16 %v504
        %v555 = vunpack.c.l.b16 %v505
        %v556 = vunpack.c.l.b16 %v506
        %v557 = vunpack.c.h.b16 %v506
        %v558 = vunpack.c.l.b16 %v507
        %v559 = vunpack.c.h.b16 %v507
        %v560 = vunpack.c.l.b16 %v508
        %v561 = vunpack.c.l.b16 %v509
        %v562 = vunpack.c.h.b16 %v509
        %v563 = vunpack.c.l.b16 %v510
        %v564 = vunpack.c.h.b16 %v510
        %v565 = vunpack.c.l.b16 %v511
        %v566 = vunpack.c.l.b16 %v512
        %v567 = vunpack.c.h.b16 %v512
        %v568 = vunpack.c.l.b16 %v513
        %v569 = vunpack.c.h.b16 %v513
        %v570 = vunpack.c.l.b16 %v514
        %v571 = vunpack.c.l.b16 %v515
        %v572 = vunpack.c.h.b16 %v515
        %v573 = vunpack.c.l.b16 %v516
        %v574 = vunpack.c.h.b16 %v516
        %v575 = vunpack.c.l.b16 %v517
        %v576 = vunpack.c.l.b16 %v518
        %v577 = vunpack.c.h.b16 %v518
        %v578 = vunpack.c.l.b16 %v519
        %v579 = vunpack.c.h.b16 %v519
        %v580 = vunpack.c.l.b16 %v520
        %v581 = vunpack.c.l.b16 %v521
        %v582 = vunpack.c.h.b16 %v521
        %v583 = vunpack.c.l.b16 %v522
        %v584 = vunpack.c.h.b16 %v522
        %v585 = vunpack.c.l.b16 %v523
        %v586 = vunpack.c.l.b16 %v524
        %v587 = vunpack.c.h.b16 %v524
        %v588 = vunpack.c.l.b16 %v525
        %v589 = vunpack.c.h.b16 %v525
        %v590 = vunpack.c.l.b16 %v526
        %v591 = vpack.c.b16 %v556, %v551
        %v592 = vpack.c.b16 %v557, %v552
        %v593 = vpack.c.b16 %v558, %v553
        %v594 = vpack.c.b16 %v559, %v554
        %v595 = vpack.c.b16 %v560, %v555
        %v596 = vpack.c.b16 %v566, %v561
        %v597 = vpack.c.b16 %v567, %v562
        %v598 = vpack.c.b16 %v568, %v563
        %v599 = vpack.c.b16 %v569, %v564
        %v600 = vpack.c.b16 %v570, %v565
        %v601 = vpack.c.b16 %v576, %v571
        %v602 = vpack.c.b16 %v577, %v572
        %v603 = vpack.c.b16 %v578, %v573
        %v604 = vpack.c.b16 %v579, %v574
        %v605 = vpack.c.b16 %v580, %v575
        %v606 = vpack.c.b16 %v586, %v581
        %v607 = vpack.c.b16 %v587, %v582
        %v608 = vpack.c.b16 %v588, %v583
        %v609 = vpack.c.b16 %v589, %v584
        %v610 = vpack.c.b16 %v590, %v585
        %v632 = vsel %vm485, %v502, 0
        %634 = vmatprep.subr.bf16.mxu0 0
        %635 = vmatpush1.bf16.msra.mxu0 0
        %636 = vmatprep.subr.bf16.mxu0 0
        %637 = vmatpush1.bf16.msra.mxu0 0
        %638 = vmatprep.subr.bf16.mxu0 0
        %639 = vmatpush1.bf16.msra.mxu0 0
        %640 = vmatprep.subr.bf16.mxu0 0
        %641 = vmatpush1.bf16.msra.mxu0 0
        %642 = vmatprep.subr.bf16.mxu0 %v607
        %643 = vmatpush1.bf16.msra.mxu0 %v606
        %644 = vmatprep.subr.bf16.mxu0 %v602
        %645 = vmatpush1.bf16.msra.mxu0 %v601
        %646 = vmatprep.subr.bf16.mxu0 %v597
        %647 = vmatpush1.bf16.msra.mxu0 %v596
        %648 = vmatprep.subr.bf16.mxu0 %v592
        %649 = vmatpush1.bf16.msra.mxu0 %v591
        %650 = vmatprep.subr.bf16.mxu0 0
        %651 = vmatpush2.bf16.msra.mxu0 0
        %652 = vmatprep.subr.bf16.mxu0 0
        %653 = vmatpush2.bf16.msra.mxu0 0
        %654 = vmatprep.subr.bf16.mxu0 0
        %655 = vmatpush2.bf16.msra.mxu0 0
        %656 = vmatprep.subr.bf16.mxu0 0
        %657 = vmatpush2.bf16.msra.mxu0 0
        %658 = vmatprep.subr.bf16.mxu0 0
        %659 = vmatpush2.bf16.msra.mxu0 0
        %660 = vmatprep.subr.bf16.mxu0 0
        %661 = vmatpush2.bf16.msra.mxu0 0
        %662 = vmatprep.subr.bf16.mxu0 0
        %663 = vmatpush2.bf16.msra.mxu0 0
        %664 = vmatprep.subr.bf16.mxu0 0
        %665 = vmatpush2.bf16.msra.mxu0 0
        %666 = vmatprep.mubr.bf16.mxu0 0
        %667 = vmatmul.mubr.bf16.gmra.mxu0 %v632
        %v668 = vpop.f32.mrf.mxu0
        %v669 = vadd.f32 0.0, %v668
        %v670 = vpop.f32.mrf.mxu0
        %v671 = vadd.f32 0.0, %v670
        %v672 = vpop.f32.mrf.mxu0
        %v673 = vpop.f32.mrf.mxu0
        %674 = vdwg.mxu0
        %675 = vmatprep.subr.bf16.mxu0 0
        %676 = vmatpush1.bf16.msra.mxu0 0
        %677 = vmatprep.subr.bf16.mxu0 0
        %678 = vmatpush1.bf16.msra.mxu0 0
        %679 = vmatprep.subr.bf16.mxu0 0
        %680 = vmatpush1.bf16.msra.mxu0 0
        %681 = vmatprep.subr.bf16.mxu0 0
        %682 = vmatpush1.bf16.msra.mxu0 0
        %683 = vmatprep.subr.bf16.mxu0 %v609
        %684 = vmatpush1.bf16.msra.mxu0 %v608
        %685 = vmatprep.subr.bf16.mxu0 %v604
        %686 = vmatpush1.bf16.msra.mxu0 %v603
        %687 = vmatprep.subr.bf16.mxu0 %v599
        %688 = vmatpush1.bf16.msra.mxu0 %v598
        %689 = vmatprep.subr.bf16.mxu0 %v594
        %690 = vmatpush1.bf16.msra.mxu0 %v593
        %691 = vmatprep.subr.bf16.mxu0 0
        %692 = vmatpush2.bf16.msra.mxu0 0
        %693 = vmatprep.subr.bf16.mxu0 0
        %694 = vmatpush2.bf16.msra.mxu0 0
        %695 = vmatprep.subr.bf16.mxu0 0
        %696 = vmatpush2.bf16.msra.mxu0 0
        %697 = vmatprep.subr.bf16.mxu0 0
        %698 = vmatpush2.bf16.msra.mxu0 0
        %699 = vmatprep.subr.bf16.mxu0 0
        %700 = vmatpush2.bf16.msra.mxu0 0
        %701 = vmatprep.subr.bf16.mxu0 0
        %702 = vmatpush2.bf16.msra.mxu0 0
        %703 = vmatprep.subr.bf16.mxu0 0
        %704 = vmatpush2.bf16.msra.mxu0 0
        %705 = vmatprep.subr.bf16.mxu0 0
        %706 = vmatpush2.bf16.msra.mxu0 0
        %707 = vmatprep.mubr.bf16.mxu0 0
        %708 = vmatmul.mubr.bf16.gmra.mxu0 %v632
        %v709 = vpop.f32.mrf.mxu0
        %v710 = vadd.f32 0.0, %v709
        %v711 = vpop.f32.mrf.mxu0
        %v712 = vadd.f32 0.0, %v711
        %v713 = vpop.f32.mrf.mxu0
        %v714 = vpop.f32.mrf.mxu0
        %715 = vdwg.mxu0
        %716 = vmatprep.subr.bf16.mxu0 0
        %717 = vmatpush1.bf16.msra.mxu0 0
        %718 = vmatprep.subr.bf16.mxu0 0
        %719 = vmatpush1.bf16.msra.mxu0 0
        %720 = vmatprep.subr.bf16.mxu0 0
        %721 = vmatpush1.bf16.msra.mxu0 0
        %722 = vmatprep.subr.bf16.mxu0 0
        %723 = vmatpush1.bf16.msra.mxu0 0
        %724 = vmatprep.subr.bf16.mxu0 0
        %725 = vmatpush1.bf16.msra.mxu0 %v610
        %726 = vmatprep.subr.bf16.mxu0 0
        %727 = vmatpush1.bf16.msra.mxu0 %v605
        %728 = vmatprep.subr.bf16.mxu0 0
        %729 = vmatpush1.bf16.msra.mxu0 %v600
        %730 = vmatprep.subr.bf16.mxu0 0
        %731 = vmatpush1.bf16.msra.mxu0 %v595
        %732 = vmatprep.subr.bf16.mxu0 0
        %733 = vmatpush2.bf16.msra.mxu0 0
        %734 = vmatprep.subr.bf16.mxu0 0
        %735 = vmatpush2.bf16.msra.mxu0 0
        %736 = vmatprep.subr.bf16.mxu0 0
        %737 = vmatpush2.bf16.msra.mxu0 0
        %738 = vmatprep.subr.bf16.mxu0 0
        %739 = vmatpush2.bf16.msra.mxu0 0
        %740 = vmatprep.subr.bf16.mxu0 0
        %741 = vmatpush2.bf16.msra.mxu0 0
        %742 = vmatprep.subr.bf16.mxu0 0
        %743 = vmatpush2.bf16.msra.mxu0 0
        %744 = vmatprep.subr.bf16.mxu0 0
        %745 = vmatpush2.bf16.msra.mxu0 0
        %746 = vmatprep.subr.bf16.mxu0 0
        %747 = vmatpush2.bf16.msra.mxu0 0
        %748 = vmatprep.mubr.bf16.mxu0 0
        %749 = vmatmul.mubr.bf16.gmra.mxu0 %v632
        %v750 = vpop.f32.mrf.mxu0
        %v751 = vadd.f32 0.0, %v750
        %v752 = vpop.f32.mrf.mxu0
        %v753 = vpop.f32.mrf.mxu0
        %v754 = vpop.f32.mrf.mxu0
        %755 = vdwg.mxu0
        %v756 = vmul.f32 %v669, %v476
        %v757 = vmul.f32 %v671, %v477
        %v758 = vadd.f32 %v756, %v757
        %v759 = vmul.f32 %v710, %v476
        %v760 = vmul.f32 %v712, %v477
        %v761 = vadd.f32 %v759, %v760
        %v762 = vmul.f32 %v751, %v751
        %vm763 = vcmask 261120
        %v764 = vsel %vm763, %v762, 0.0
        %765 = vadd.xlane.f32.xlu0 %v764
        %v766 = vpop.xlane.xlu0 %765
        %v767 = vrcp.pop 32.0
        %v768 = vmul.f32 %v766, %v767
        %v769 = vadd.f32 %v768, 1e-06
        %v770 = vrsqrt.pop %v769
        %v771 = vmul.f32 %v751, %v770
        %v772 = vld [vmem:[#allocation8] sm:$0x1]
        %v774 = vlaneseq
        %v775 = vshrl.u32 %v774, 7
        %v776 = vsub.s32 0, %v775
        %v777 = vrot.slane %v772, %v776
        %v779 = vmul.f32 %v771, %v777
        %v780 = vpack.c.bf16 %v779, %v779
        %v781 = vld [vmem:[%s7] sm:$0xff]
        %v782 = vld [vmem:[%s7 + $0x8] sm:$0xff]
        %v783 = vld [vmem:[%s7 + $0x10] sm:$0xff]
        %v784 = vld [vmem:[%s7 + $0x18] sm:$0xff]
        %v789 = vunpack.c.l.b16 %v781
        %v790 = vunpack.c.h.b16 %v781
        %v791 = vunpack.c.l.b16 %v782
        %v792 = vunpack.c.h.b16 %v782
        %v793 = vunpack.c.l.b16 %v783
        %v794 = vunpack.c.h.b16 %v783
        %v795 = vunpack.c.l.b16 %v784
        %v796 = vunpack.c.h.b16 %v784
        %v797 = vpack.c.b16 %v791, %v789
        %v798 = vpack.c.b16 %v792, %v790
        %v799 = vpack.c.b16 %v795, %v793
        %v800 = vpack.c.b16 %v796, %v794
        %v806 = vsel %vm763, %v780, 0
        %808 = vmatprep.subr.bf16.mxu0 0
        %809 = vmatpush1.bf16.msra.mxu0 0
        %810 = vmatprep.subr.bf16.mxu0 0
        %811 = vmatpush1.bf16.msra.mxu0 0
        %812 = vmatprep.subr.bf16.mxu0 0
        %813 = vmatpush1.bf16.msra.mxu0 0
        %814 = vmatprep.subr.bf16.mxu0 0
        %815 = vmatpush1.bf16.msra.mxu0 0
        %816 = vmatprep.subr.bf16.mxu0 0
        %817 = vmatpush1.bf16.msra.mxu0 0
        %818 = vmatprep.subr.bf16.mxu0 0
        %819 = vmatpush1.bf16.msra.mxu0 0
        %820 = vmatprep.subr.bf16.mxu0 %v800
        %821 = vmatpush1.bf16.msra.mxu0 %v799
        %822 = vmatprep.subr.bf16.mxu0 %v798
        %823 = vmatpush1.bf16.msra.mxu0 %v797
        %824 = vmatprep.subr.bf16.mxu0 0
        %825 = vmatpush2.bf16.msra.mxu0 0
        %826 = vmatprep.subr.bf16.mxu0 0
        %827 = vmatpush2.bf16.msra.mxu0 0
        %828 = vmatprep.subr.bf16.mxu0 0
        %829 = vmatpush2.bf16.msra.mxu0 0
        %830 = vmatprep.subr.bf16.mxu0 0
        %831 = vmatpush2.bf16.msra.mxu0 0
        %832 = vmatprep.subr.bf16.mxu0 0
        %833 = vmatpush2.bf16.msra.mxu0 0
        %834 = vmatprep.subr.bf16.mxu0 0
        %835 = vmatpush2.bf16.msra.mxu0 0
        %836 = vmatprep.subr.bf16.mxu0 0
        %837 = vmatpush2.bf16.msra.mxu0 0
        %838 = vmatprep.subr.bf16.mxu0 0
        %839 = vmatpush2.bf16.msra.mxu0 0
        %840 = vmatprep.mubr.bf16.mxu0 0
        %841 = vmatmul.mubr.bf16.gmra.mxu0 %v806
        %v842 = vpop.f32.mrf.mxu0
        %v843 = vadd.f32 0.0, %v842
        %v844 = vpop.f32.mrf.mxu0
        %v845 = vadd.f32 0.0, %v844
        %v846 = vpop.f32.mrf.mxu0
        %v847 = vpop.f32.mrf.mxu0
        %848 = vdwg.mxu0
        %v849 = vadd.f32 %v843, %v761
        %v850 = vpack.c.bf16 %v849, %v849
        %v851 = vpack.c.bf16 %v845, %v845
        %v852 = vpack.c.bf16 %v758, %v758
        %v854 = vsel %vm763, %v852, 0
        %v857 = vsel %vm763, %v850, 0
        %859 = vmatprep.subr.bf16.mxu0 0
        %860 = vmatpush1.bf16.xpose.msra.mxu0 0
        %861 = vmatprep.subr.bf16.mxu0 0
        %862 = vmatpush1.bf16.xpose.msra.mxu0 0
        %863 = vmatprep.subr.bf16.mxu0 0
        %864 = vmatpush1.bf16.xpose.msra.mxu0 0
        %865 = vmatprep.subr.bf16.mxu0 0
        %866 = vmatpush1.bf16.xpose.msra.mxu0 0
        %867 = vmatprep.subr.bf16.mxu0 0
        %868 = vmatpush1.bf16.xpose.msra.mxu0 0
        %869 = vmatprep.subr.bf16.mxu0 0
        %870 = vmatpush1.bf16.xpose.msra.mxu0 0
        %871 = vmatprep.subr.bf16.mxu0 0
        %872 = vmatpush1.bf16.xpose.msra.mxu0 0
        %873 = vmatprep.subr.bf16.mxu0 0
        %874 = vmatpush1.bf16.xpose.msra.mxu0 %v857
        %875 = vmatprep.subr.bf16.mxu0 0
        %876 = vmatpush2.bf16.xpose.msra.mxu0 0
        %877 = vmatprep.subr.bf16.mxu0 0
        %878 = vmatpush2.bf16.xpose.msra.mxu0 0
        %879 = vmatprep.subr.bf16.mxu0 0
        %880 = vmatpush2.bf16.xpose.msra.mxu0 0
        %881 = vmatprep.subr.bf16.mxu0 0
        %882 = vmatpush2.bf16.xpose.msra.mxu0 0
        %883 = vmatprep.subr.bf16.mxu0 0
        %884 = vmatpush2.bf16.xpose.msra.mxu0 0
        %885 = vmatprep.subr.bf16.mxu0 0
        %886 = vmatpush2.bf16.xpose.msra.mxu0 0
        %887 = vmatprep.subr.bf16.mxu0 0
        %888 = vmatpush2.bf16.xpose.msra.mxu0 0
        %889 = vmatprep.subr.bf16.mxu0 0
        %890 = vmatpush2.bf16.xpose.msra.mxu0 0
        %891 = vmatprep.mubr.bf16.mxu0 0
        %892 = vmatmul.mubr.bf16.gmra.mxu0 %v854
        %v893 = vpop.f32.mrf.mxu0
        %v894 = vadd.f32 0.0, %v893
        %v895 = vpop.f32.mrf.mxu0
        %v896 = vpop.f32.mrf.mxu0
        %v897 = vpop.f32.mrf.mxu0
        %898 = vdwg.mxu0
        %v899 = vmul.f32 %v894, 0.20412415
        %v900 = vadd.f32 %v899, %v483
        %vm901 = vcmask 64512
        %v902 = vsel %vm901, %v900, -inf
        %903 = vmax.xlane.f32.xlu0 %v902
        %v904 = vpop.xlane.xlu0 %903
        %v905 = vsub.f32 %v900, %v904
        %v906 = vmul.f32 %v905, 1.442695
        %v907 = vpow.pop %v906
        %v908 = vsel %vm901, %v907, 0.0
        %909 = vadd.xlane.f32.xlu0 %v908
        %v910 = vpop.xlane.xlu0 %909
        %v911 = vrcp.pop %v910
        %v912 = vmul.f32 %v907, %v911
        %v913 = vpack.c.bf16 %v912, %v912
        %v915 = vsel %vm901, %v913, 0
        %vm917 = vcmask 1043456
        %v919 = vsel %vm917, %v851, 0
        %921 = vmatprep.subr.bf16.mxu0 0
        %922 = vmatpush1.bf16.msra.mxu0 0
        %923 = vmatprep.subr.bf16.mxu0 0
        %924 = vmatpush1.bf16.msra.mxu0 0
        %925 = vmatprep.subr.bf16.mxu0 0
        %926 = vmatpush1.bf16.msra.mxu0 0
        %927 = vmatprep.subr.bf16.mxu0 0
        %928 = vmatpush1.bf16.msra.mxu0 0
        %929 = vmatprep.subr.bf16.mxu0 0
        %930 = vmatpush1.bf16.msra.mxu0 0
        %931 = vmatprep.subr.bf16.mxu0 0
        %932 = vmatpush1.bf16.msra.mxu0 0
        %933 = vmatprep.subr.bf16.mxu0 0
        %934 = vmatpush1.bf16.msra.mxu0 0
        %935 = vmatprep.subr.bf16.mxu0 0
        %936 = vmatpush1.bf16.msra.mxu0 %v919
        %937 = vmatprep.subr.bf16.mxu0 0
        %938 = vmatpush2.bf16.msra.mxu0 0
        %939 = vmatprep.subr.bf16.mxu0 0
        %940 = vmatpush2.bf16.msra.mxu0 0
        %941 = vmatprep.subr.bf16.mxu0 0
        %942 = vmatpush2.bf16.msra.mxu0 0
        %943 = vmatprep.subr.bf16.mxu0 0
        %944 = vmatpush2.bf16.msra.mxu0 0
        %945 = vmatprep.subr.bf16.mxu0 0
        %946 = vmatpush2.bf16.msra.mxu0 0
        %947 = vmatprep.subr.bf16.mxu0 0
        %948 = vmatpush2.bf16.msra.mxu0 0
        %949 = vmatprep.subr.bf16.mxu0 0
        %950 = vmatpush2.bf16.msra.mxu0 0
        %951 = vmatprep.subr.bf16.mxu0 0
        %952 = vmatpush2.bf16.msra.mxu0 0
        %953 = vmatprep.mubr.bf16.mxu0 0
        %954 = vmatmul.mubr.bf16.gmra.mxu0 %v915
        %v955 = vpop.f32.mrf.mxu0
        %v956 = vadd.f32 0.0, %v955
        %v957 = vpop.f32.mrf.mxu0
        %v958 = vpop.f32.mrf.mxu0
        %v959 = vpop.f32.mrf.mxu0
        %960 = vdwg.mxu0
        %962 = vrot.lane.b32.xlu0 %v852, 96
        %v963 = vpop.permute.xlu0 %962
        %965 = vrot.lane.b32.xlu0 %v850, 96
        %v966 = vpop.permute.xlu0 %965
        %v968 = vsel %vm763, %v963, 0
        %v971 = vsel %vm763, %v966, 0
        %973 = vmatprep.subr.bf16.mxu0 0
        %974 = vmatpush1.bf16.xpose.msra.mxu0 0
        %975 = vmatprep.subr.bf16.mxu0 0
        %976 = vmatpush1.bf16.xpose.msra.mxu0 0
        %977 = vmatprep.subr.bf16.mxu0 0
        %978 = vmatpush1.bf16.xpose.msra.mxu0 0
        %979 = vmatprep.subr.bf16.mxu0 0
        %980 = vmatpush1.bf16.xpose.msra.mxu0 0
        %981 = vmatprep.subr.bf16.mxu0 0
        %982 = vmatpush1.bf16.xpose.msra.mxu0 0
        %983 = vmatprep.subr.bf16.mxu0 0
        %984 = vmatpush1.bf16.xpose.msra.mxu0 0
        %985 = vmatprep.subr.bf16.mxu0 0
        %986 = vmatpush1.bf16.xpose.msra.mxu0 0
        %987 = vmatprep.subr.bf16.mxu0 0
        %988 = vmatpush1.bf16.xpose.msra.mxu0 %v971
        %989 = vmatprep.subr.bf16.mxu0 0
        %990 = vmatpush2.bf16.xpose.msra.mxu0 0
        %991 = vmatprep.subr.bf16.mxu0 0
        %992 = vmatpush2.bf16.xpose.msra.mxu0 0
        %993 = vmatprep.subr.bf16.mxu0 0
        %994 = vmatpush2.bf16.xpose.msra.mxu0 0
        %995 = vmatprep.subr.bf16.mxu0 0
        %996 = vmatpush2.bf16.xpose.msra.mxu0 0
        %997 = vmatprep.subr.bf16.mxu0 0
        %998 = vmatpush2.bf16.xpose.msra.mxu0 0
        %999 = vmatprep.subr.bf16.mxu0 0
        %1000 = vmatpush2.bf16.xpose.msra.mxu0 0
        %1001 = vmatprep.subr.bf16.mxu0 0
        %1002 = vmatpush2.bf16.xpose.msra.mxu0 0
        %1003 = vmatprep.subr.bf16.mxu0 0
        %1004 = vmatpush2.bf16.xpose.msra.mxu0 0
        %1005 = vmatprep.mubr.bf16.mxu0 0
        %1006 = vmatmul.mubr.bf16.gmra.mxu0 %v968
        %v1007 = vpop.f32.mrf.mxu0
        %v1008 = vadd.f32 0.0, %v1007
        %v1009 = vpop.f32.mrf.mxu0
        %v1010 = vpop.f32.mrf.mxu0
        %v1011 = vpop.f32.mrf.mxu0
        %1012 = vdwg.mxu0
        %v1013 = vmul.f32 %v1008, 0.20412415
        %v1014 = vadd.f32 %v1013, %v483
        %v1015 = vsel %vm901, %v1014, -inf
        %1016 = vmax.xlane.f32.xlu0 %v1015
        %v1017 = vpop.xlane.xlu0 %1016
        %v1018 = vsub.f32 %v1014, %v1017
        %v1019 = vmul.f32 %v1018, 1.442695
        %v1020 = vpow.pop %v1019
        %v1021 = vsel %vm901, %v1020, 0.0
        %1022 = vadd.xlane.f32.xlu0 %v1021
        %v1023 = vpop.xlane.xlu0 %1022
        %v1024 = vrcp.pop %v1023
        %v1025 = vmul.f32 %v1020, %v1024
        %v1026 = vpack.c.bf16 %v1025, %v1025
        %1028 = vrot.lane.b32.xlu0 %v851, 112
        %v1029 = vpop.permute.xlu0 %1028
        %v1031 = vsel %vm901, %v1026, 0
        %v1034 = vsel %vm917, %v1029, 0
        %1036 = vmatprep.subr.bf16.mxu0 0
        %1037 = vmatpush1.bf16.msra.mxu0 0
        %1038 = vmatprep.subr.bf16.mxu0 0
        %1039 = vmatpush1.bf16.msra.mxu0 0
        %1040 = vmatprep.subr.bf16.mxu0 0
        %1041 = vmatpush1.bf16.msra.mxu0 0
        %1042 = vmatprep.subr.bf16.mxu0 0
        %1043 = vmatpush1.bf16.msra.mxu0 0
        %1044 = vmatprep.subr.bf16.mxu0 0
        %1045 = vmatpush1.bf16.msra.mxu0 0
        %1046 = vmatprep.subr.bf16.mxu0 0
        %1047 = vmatpush1.bf16.msra.mxu0 0
        %1048 = vmatprep.subr.bf16.mxu0 0
        %1049 = vmatpush1.bf16.msra.mxu0 0
        %1050 = vmatprep.subr.bf16.mxu0 0
        %1051 = vmatpush1.bf16.msra.mxu0 %v1034
        %1052 = vmatprep.subr.bf16.mxu0 0
        %1053 = vmatpush2.bf16.msra.mxu0 0
        %1054 = vmatprep.subr.bf16.mxu0 0
        %1055 = vmatpush2.bf16.msra.mxu0 0
        %1056 = vmatprep.subr.bf16.mxu0 0
        %1057 = vmatpush2.bf16.msra.mxu0 0
        %1058 = vmatprep.subr.bf16.mxu0 0
        %1059 = vmatpush2.bf16.msra.mxu0 0
        %1060 = vmatprep.subr.bf16.mxu0 0
        %1061 = vmatpush2.bf16.msra.mxu0 0
        %1062 = vmatprep.subr.bf16.mxu0 0
        %1063 = vmatpush2.bf16.msra.mxu0 0
        %1064 = vmatprep.subr.bf16.mxu0 0
        %1065 = vmatpush2.bf16.msra.mxu0 0
        %1066 = vmatprep.subr.bf16.mxu0 0
        %1067 = vmatpush2.bf16.msra.mxu0 0
        %1068 = vmatprep.mubr.bf16.mxu0 0
        %1069 = vmatmul.mubr.bf16.gmra.mxu0 %v1031
        %v1070 = vpop.f32.mrf.mxu0
        %v1071 = vadd.f32 0.0, %v1070
        %v1072 = vpop.f32.mrf.mxu0
        %v1073 = vpop.f32.mrf.mxu0
        %v1074 = vpop.f32.mrf.mxu0
        %1075 = vdwg.mxu0
        %1076 = vrot.lane.b32.xlu0 %v852, 64
        %v1077 = vpop.permute.xlu0 %1076
        %1078 = vrot.lane.b32.xlu0 %v850, 64
        %v1079 = vpop.permute.xlu0 %1078
        %v1081 = vsel %vm763, %v1077, 0
        %v1084 = vsel %vm763, %v1079, 0
        %1086 = vmatprep.subr.bf16.mxu0 0
        %1087 = vmatpush1.bf16.xpose.msra.mxu0 0
        %1088 = vmatprep.subr.bf16.mxu0 0
        %1089 = vmatpush1.bf16.xpose.msra.mxu0 0
        %1090 = vmatprep.subr.bf16.mxu0 0
        %1091 = vmatpush1.bf16.xpose.msra.mxu0 0
        %1092 = vmatprep.subr.bf16.mxu0 0
        %1093 = vmatpush1.bf16.xpose.msra.mxu0 0
        %1094 = vmatprep.subr.bf16.mxu0 0
        %1095 = vmatpush1.bf16.xpose.msra.mxu0 0
        %1096 = vmatprep.subr.bf16.mxu0 0
        %1097 = vmatpush1.bf16.xpose.msra.mxu0 0
        %1098 = vmatprep.subr.bf16.mxu0 0
        %1099 = vmatpush1.bf16.xpose.msra.mxu0 0
        %1100 = vmatprep.subr.bf16.mxu0 0
        %1101 = vmatpush1.bf16.xpose.msra.mxu0 %v1084
        %1102 = vmatprep.subr.bf16.mxu0 0
        %1103 = vmatpush2.bf16.xpose.msra.mxu0 0
        %1104 = vmatprep.subr.bf16.mxu0 0
        %1105 = vmatpush2.bf16.xpose.msra.mxu0 0
        %1106 = vmatprep.subr.bf16.mxu0 0
        %1107 = vmatpush2.bf16.xpose.msra.mxu0 0
        %1108 = vmatprep.subr.bf16.mxu0 0
        %1109 = vmatpush2.bf16.xpose.msra.mxu0 0
        %1110 = vmatprep.subr.bf16.mxu0 0
        %1111 = vmatpush2.bf16.xpose.msra.mxu0 0
        %1112 = vmatprep.subr.bf16.mxu0 0
        %1113 = vmatpush2.bf16.xpose.msra.mxu0 0
        %1114 = vmatprep.subr.bf16.mxu0 0
        %1115 = vmatpush2.bf16.xpose.msra.mxu0 0
        %1116 = vmatprep.subr.bf16.mxu0 0
        %1117 = vmatpush2.bf16.xpose.msra.mxu0 0
        %1118 = vmatprep.mubr.bf16.mxu0 0
        %1119 = vmatmul.mubr.bf16.gmra.mxu0 %v1081
        %v1120 = vpop.f32.mrf.mxu0
        %v1121 = vadd.f32 0.0, %v1120
        %v1122 = vpop.f32.mrf.mxu0
        %v1123 = vpop.f32.mrf.mxu0
        %v1124 = vpop.f32.mrf.mxu0
        %1125 = vdwg.mxu0
        %v1126 = vmul.f32 %v1121, 0.20412415
        %v1127 = vadd.f32 %v1126, %v483
        %v1128 = vsel %vm901, %v1127, -inf
        %1129 = vmax.xlane.f32.xlu0 %v1128
        %v1130 = vpop.xlane.xlu0 %1129
        %v1131 = vsub.f32 %v1127, %v1130
        %v1132 = vmul.f32 %v1131, 1.442695
        %v1133 = vpow.pop %v1132
        %v1134 = vsel %vm901, %v1133, 0.0
        %1135 = vadd.xlane.f32.xlu0 %v1134
        %v1136 = vpop.xlane.xlu0 %1135
        %v1137 = vrcp.pop %v1136
        %v1138 = vmul.f32 %v1133, %v1137
        %v1139 = vpack.c.bf16 %v1138, %v1138
        %1140 = vrot.lane.b32.xlu0 %v851, 96
        %v1141 = vpop.permute.xlu0 %1140
        %v1143 = vsel %vm901, %v1139, 0
        %v1146 = vsel %vm917, %v1141, 0
        %1148 = vmatprep.subr.bf16.mxu0 0
        %1149 = vmatpush1.bf16.msra.mxu0 0
        %1150 = vmatprep.subr.bf16.mxu0 0
        %1151 = vmatpush1.bf16.msra.mxu0 0
        %1152 = vmatprep.subr.bf16.mxu0 0
        %1153 = vmatpush1.bf16.msra.mxu0 0
        %1154 = vmatprep.subr.bf16.mxu0 0
        %1155 = vmatpush1.bf16.msra.mxu0 0
        %1156 = vmatprep.subr.bf16.mxu0 0
        %1157 = vmatpush1.bf16.msra.mxu0 0
        %1158 = vmatprep.subr.bf16.mxu0 0
        %1159 = vmatpush1.bf16.msra.mxu0 0
        %1160 = vmatprep.subr.bf16.mxu0 0
        %1161 = vmatpush1.bf16.msra.mxu0 0
        %1162 = vmatprep.subr.bf16.mxu0 0
        %1163 = vmatpush1.bf16.msra.mxu0 %v1146
        %1164 = vmatprep.subr.bf16.mxu0 0
        %1165 = vmatpush2.bf16.msra.mxu0 0
        %1166 = vmatprep.subr.bf16.mxu0 0
        %1167 = vmatpush2.bf16.msra.mxu0 0
        %1168 = vmatprep.subr.bf16.mxu0 0
        %1169 = vmatpush2.bf16.msra.mxu0 0
        %1170 = vmatprep.subr.bf16.mxu0 0
        %1171 = vmatpush2.bf16.msra.mxu0 0
        %1172 = vmatprep.subr.bf16.mxu0 0
        %1173 = vmatpush2.bf16.msra.mxu0 0
        %1174 = vmatprep.subr.bf16.mxu0 0
        %1175 = vmatpush2.bf16.msra.mxu0 0
        %1176 = vmatprep.subr.bf16.mxu0 0
        %1177 = vmatpush2.bf16.msra.mxu0 0
        %1178 = vmatprep.subr.bf16.mxu0 0
        %1179 = vmatpush2.bf16.msra.mxu0 0
        %1180 = vmatprep.mubr.bf16.mxu0 0
        %1181 = vmatmul.mubr.bf16.gmra.mxu0 %v1143
        %v1182 = vpop.f32.mrf.mxu0
        %v1183 = vadd.f32 0.0, %v1182
        %v1184 = vpop.f32.mrf.mxu0
        %v1185 = vpop.f32.mrf.mxu0
        %v1186 = vpop.f32.mrf.mxu0
        %1187 = vdwg.mxu0
        %1188 = vrot.lane.b32.xlu0 %v852, 32
        %v1189 = vpop.permute.xlu0 %1188
        %1190 = vrot.lane.b32.xlu0 %v850, 32
        %v1191 = vpop.permute.xlu0 %1190
        %v1193 = vsel %vm763, %v1189, 0
        %v1196 = vsel %vm763, %v1191, 0
        %1198 = vmatprep.subr.bf16.mxu0 0
        %1199 = vmatpush1.bf16.xpose.msra.mxu0 0
        %1200 = vmatprep.subr.bf16.mxu0 0
        %1201 = vmatpush1.bf16.xpose.msra.mxu0 0
        %1202 = vmatprep.subr.bf16.mxu0 0
        %1203 = vmatpush1.bf16.xpose.msra.mxu0 0
        %1204 = vmatprep.subr.bf16.mxu0 0
        %1205 = vmatpush1.bf16.xpose.msra.mxu0 0
        %1206 = vmatprep.subr.bf16.mxu0 0
        %1207 = vmatpush1.bf16.xpose.msra.mxu0 0
        %1208 = vmatprep.subr.bf16.mxu0 0
        %1209 = vmatpush1.bf16.xpose.msra.mxu0 0
        %1210 = vmatprep.subr.bf16.mxu0 0
        %1211 = vmatpush1.bf16.xpose.msra.mxu0 0
        %1212 = vmatprep.subr.bf16.mxu0 0
        %1213 = vmatpush1.bf16.xpose.msra.mxu0 %v1196
        %1214 = vmatprep.subr.bf16.mxu0 0
        %1215 = vmatpush2.bf16.xpose.msra.mxu0 0
        %1216 = vmatprep.subr.bf16.mxu0 0
        %1217 = vmatpush2.bf16.xpose.msra.mxu0 0
        %1218 = vmatprep.subr.bf16.mxu0 0
        %1219 = vmatpush2.bf16.xpose.msra.mxu0 0
        %1220 = vmatprep.subr.bf16.mxu0 0
        %1221 = vmatpush2.bf16.xpose.msra.mxu0 0
        %1222 = vmatprep.subr.bf16.mxu0 0
        %1223 = vmatpush2.bf16.xpose.msra.mxu0 0
        %1224 = vmatprep.subr.bf16.mxu0 0
        %1225 = vmatpush2.bf16.xpose.msra.mxu0 0
        %1226 = vmatprep.subr.bf16.mxu0 0
        %1227 = vmatpush2.bf16.xpose.msra.mxu0 0
        %1228 = vmatprep.subr.bf16.mxu0 0
        %1229 = vmatpush2.bf16.xpose.msra.mxu0 0
        %1230 = vmatprep.mubr.bf16.mxu0 0
        %1231 = vmatmul.mubr.bf16.gmra.mxu0 %v1193
        %v1232 = vpop.f32.mrf.mxu0
        %v1233 = vadd.f32 0.0, %v1232
        %v1234 = vpop.f32.mrf.mxu0
        %v1235 = vpop.f32.mrf.mxu0
        %v1236 = vpop.f32.mrf.mxu0
        %1237 = vdwg.mxu0
        %v1238 = vmul.f32 %v1233, 0.20412415
        %v1239 = vadd.f32 %v1238, %v483
        %v1240 = vsel %vm901, %v1239, -inf
        %1241 = vmax.xlane.f32.xlu0 %v1240
        %v1242 = vpop.xlane.xlu0 %1241
        %v1243 = vsub.f32 %v1239, %v1242
        %v1244 = vmul.f32 %v1243, 1.442695
        %v1245 = vpow.pop %v1244
        %v1246 = vsel %vm901, %v1245, 0.0
        %1247 = vadd.xlane.f32.xlu0 %v1246
        %v1248 = vpop.xlane.xlu0 %1247
        %v1249 = vrcp.pop %v1248
        %v1250 = vmul.f32 %v1245, %v1249
        %v1251 = vpack.c.bf16 %v1250, %v1250
        %1252 = vrot.lane.b32.xlu0 %v851, 80
        %v1253 = vpop.permute.xlu0 %1252
        %v1255 = vsel %vm901, %v1251, 0
        %v1258 = vsel %vm917, %v1253, 0
        %1260 = vmatprep.subr.bf16.mxu0 0
        %1261 = vmatpush1.bf16.msra.mxu0 0
        %1262 = vmatprep.subr.bf16.mxu0 0
        %1263 = vmatpush1.bf16.msra.mxu0 0
        %1264 = vmatprep.subr.bf16.mxu0 0
        %1265 = vmatpush1.bf16.msra.mxu0 0
        %1266 = vmatprep.subr.bf16.mxu0 0
        %1267 = vmatpush1.bf16.msra.mxu0 0
        %1268 = vmatprep.subr.bf16.mxu0 0
        %1269 = vmatpush1.bf16.msra.mxu0 0
        %1270 = vmatprep.subr.bf16.mxu0 0
        %1271 = vmatpush1.bf16.msra.mxu0 0
        %1272 = vmatprep.subr.bf16.mxu0 0
        %1273 = vmatpush1.bf16.msra.mxu0 0
        %1274 = vmatprep.subr.bf16.mxu0 0
        %1275 = vmatpush1.bf16.msra.mxu0 %v1258
        %1276 = vmatprep.subr.bf16.mxu0 0
        %1277 = vmatpush2.bf16.msra.mxu0 0
        %1278 = vmatprep.subr.bf16.mxu0 0
        %1279 = vmatpush2.bf16.msra.mxu0 0
        %1280 = vmatprep.subr.bf16.mxu0 0
        %1281 = vmatpush2.bf16.msra.mxu0 0
        %1282 = vmatprep.subr.bf16.mxu0 0
        %1283 = vmatpush2.bf16.msra.mxu0 0
        %1284 = vmatprep.subr.bf16.mxu0 0
        %1285 = vmatpush2.bf16.msra.mxu0 0
        %1286 = vmatprep.subr.bf16.mxu0 0
        %1287 = vmatpush2.bf16.msra.mxu0 0
        %1288 = vmatprep.subr.bf16.mxu0 0
        %1289 = vmatpush2.bf16.msra.mxu0 0
        %1290 = vmatprep.subr.bf16.mxu0 0
        %1291 = vmatpush2.bf16.msra.mxu0 0
        %1292 = vmatprep.mubr.bf16.mxu0 0
        %1293 = vmatmul.mubr.bf16.gmra.mxu0 %v1255
        %v1294 = vpop.f32.mrf.mxu0
        %v1295 = vadd.f32 0.0, %v1294
        %v1296 = vpop.f32.mrf.mxu0
        %v1297 = vpop.f32.mrf.mxu0
        %v1298 = vpop.f32.mrf.mxu0
        %1299 = vdwg.mxu0
        %1301 = vrot.lane.b32.xlu0 %v1071, 16
        %v1302 = vpop.permute.xlu0 %1301
        %1305 = vrot.lane.b32.xlu0 %v1183, 32
        %v1306 = vpop.permute.xlu0 %1305
        %1309 = vrot.lane.b32.xlu0 %v1295, 48
        %v1310 = vpop.permute.xlu0 %1309
        %vm1312 = vcmask 130048
        %v1313 = vsel %vm1312, %v956, %v1302
        %v1314 = vsel %vm763, %v1313, %v1306
        %vm1315 = vcmask 392192
        %v1316 = vsel %vm1315, %v1314, %v1310
        %v1317 = vpack.c.bf16 %v1316, %v1316
        %v1318 = vld [vmem:[#allocation13] sm:$0xf]
        %v1319 = vld [vmem:[#allocation13 + $0x4] sm:$0xf]
        %v1320 = vld [vmem:[#allocation13 + $0x8] sm:$0xf]
        %v1321 = vld [vmem:[#allocation13 + $0xc] sm:$0xf]
        %v1322 = vld [vmem:[#allocation13 + $0x10] sm:$0xf]
        %v1323 = vld [vmem:[#allocation13 + $0x14] sm:$0xf]
        %v1324 = vld [vmem:[#allocation13 + $0x18] sm:$0xf]
        %v1325 = vld [vmem:[#allocation13 + $0x1c] sm:$0xf]
        %v1334 = vunpack.c.l.b16 %v1318
        %v1335 = vunpack.c.l.b16 %v1319
        %v1336 = vunpack.c.l.b16 %v1320
        %v1337 = vunpack.c.l.b16 %v1321
        %v1338 = vunpack.c.l.b16 %v1322
        %v1339 = vunpack.c.l.b16 %v1323
        %v1340 = vunpack.c.l.b16 %v1324
        %v1341 = vunpack.c.l.b16 %v1325
        %v1342 = vpack.c.b16 %v1335, %v1334
        %v1343 = vpack.c.b16 %v1337, %v1336
        %v1344 = vpack.c.b16 %v1339, %v1338
        %v1345 = vpack.c.b16 %v1341, %v1340
        %v1351 = vsel %vm485, %v1317, 0
        %1353 = vmatprep.subr.bf16.mxu0 0
        %1354 = vmatpush1.bf16.msra.mxu0 0
        %1355 = vmatprep.subr.bf16.mxu0 0
        %1356 = vmatpush1.bf16.msra.mxu0 0
        %1357 = vmatprep.subr.bf16.mxu0 0
        %1358 = vmatpush1.bf16.msra.mxu0 0
        %1359 = vmatprep.subr.bf16.mxu0 0
        %1360 = vmatpush1.bf16.msra.mxu0 0
        %1361 = vmatprep.subr.bf16.mxu0 0
        %1362 = vmatpush1.bf16.msra.mxu0 %v1345
        %1363 = vmatprep.subr.bf16.mxu0 0
        %1364 = vmatpush1.bf16.msra.mxu0 %v1344
        %1365 = vmatprep.subr.bf16.mxu0 0
        %1366 = vmatpush1.bf16.msra.mxu0 %v1343
        %1367 = vmatprep.subr.bf16.mxu0 0
        %1368 = vmatpush1.bf16.msra.mxu0 %v1342
        %1369 = vmatprep.subr.bf16.mxu0 0
        %1370 = vmatpush2.bf16.msra.mxu0 0
        %1371 = vmatprep.subr.bf16.mxu0 0
        %1372 = vmatpush2.bf16.msra.mxu0 0
        %1373 = vmatprep.subr.bf16.mxu0 0
        %1374 = vmatpush2.bf16.msra.mxu0 0
        %1375 = vmatprep.subr.bf16.mxu0 0
        %1376 = vmatpush2.bf16.msra.mxu0 0
        %1377 = vmatprep.subr.bf16.mxu0 0
        %1378 = vmatpush2.bf16.msra.mxu0 0
        %1379 = vmatprep.subr.bf16.mxu0 0
        %1380 = vmatpush2.bf16.msra.mxu0 0
        %1381 = vmatprep.subr.bf16.mxu0 0
        %1382 = vmatpush2.bf16.msra.mxu0 0
        %1383 = vmatprep.subr.bf16.mxu0 0
        %1384 = vmatpush2.bf16.msra.mxu0 0
        %1385 = vmatprep.mubr.bf16.mxu0 0
        %1386 = vmatmul.mubr.bf16.gmra.mxu0 %v1351
        %v1387 = vpop.f32.mrf.mxu0
        %v1388 = vadd.f32 0.0, %v1387
        %v1389 = vpop.f32.mrf.mxu0
        %v1390 = vpop.f32.mrf.mxu0
        %v1391 = vpop.f32.mrf.mxu0
        %1392 = vdwg.mxu0
        %v1393 = vadd.f32 %v475, %v1388
        %v1394 = vmul.f32 %v1393, %v1393
        %v1395 = vsel %vm485, %v1394, 0.0
        %1396 = vadd.xlane.f32.xlu0 %v1395
        %v1397 = vpop.xlane.xlu0 %1396
        %v1398 = vmul.f32 %v1397, %v489
        %v1399 = vadd.f32 %v1398, 1e-06
        %v1400 = vrsqrt.pop %v1399
        %v1401 = vmul.f32 %v1393, %v1400
        %v1402 = vld [vmem:[#allocation10] sm:$0x1]
        %v1404 = vlaneseq
        %v1405 = vshrl.u32 %v1404, 7
        %v1406 = vsub.s32 0, %v1405
        %v1407 = vrot.slane %v1402, %v1406
        %v1409 = vmul.f32 %v1401, %v1407
        %v1410 = vpack.c.bf16 %v1409, %v1409
        %v1411 = vld [vmem:[%s9] sm:$0xff]
        %v1412 = vld [vmem:[%s9 + $0x8] sm:$0xff]
        %v1413 = vld [vmem:[%s9 + $0x10] sm:$0xff]
        %v1414 = vld [vmem:[%s9 + $0x18] sm:$0xff]
        %v1415 = vld [vmem:[%s9 + $0x20] sm:$0xff]
        %v1416 = vld [vmem:[%s9 + $0x28] sm:$0xff]
        %v1417 = vld [vmem:[%s9 + $0x30] sm:$0xff]
        %v1418 = vld [vmem:[%s9 + $0x38] sm:$0xff]
        %v1427 = vunpack.c.l.b16 %v1411
        %v1428 = vunpack.c.h.b16 %v1411
        %v1429 = vunpack.c.l.b16 %v1412
        %v1430 = vunpack.c.h.b16 %v1412
        %v1431 = vunpack.c.l.b16 %v1413
        %v1432 = vunpack.c.h.b16 %v1413
        %v1433 = vunpack.c.l.b16 %v1414
        %v1434 = vunpack.c.h.b16 %v1414
        %v1435 = vunpack.c.l.b16 %v1415
        %v1436 = vunpack.c.h.b16 %v1415
        %v1437 = vunpack.c.l.b16 %v1416
        %v1438 = vunpack.c.h.b16 %v1416
        %v1439 = vunpack.c.l.b16 %v1417
        %v1440 = vunpack.c.h.b16 %v1417
        %v1441 = vunpack.c.l.b16 %v1418
        %v1442 = vunpack.c.h.b16 %v1418
        %v1443 = vpack.c.b16 %v1429, %v1427
        %v1444 = vpack.c.b16 %v1430, %v1428
        %v1445 = vpack.c.b16 %v1433, %v1431
        %v1446 = vpack.c.b16 %v1434, %v1432
        %v1447 = vpack.c.b16 %v1437, %v1435
        %v1448 = vpack.c.b16 %v1438, %v1436
        %v1449 = vpack.c.b16 %v1441, %v1439
        %v1450 = vpack.c.b16 %v1442, %v1440
        %v1460 = vsel %vm485, %v1410, 0
        %1462 = vmatprep.subr.bf16.mxu0 0
        %1463 = vmatpush1.bf16.msra.mxu0 0
        %1464 = vmatprep.subr.bf16.mxu0 0
        %1465 = vmatpush1.bf16.msra.mxu0 0
        %1466 = vmatprep.subr.bf16.mxu0 0
        %1467 = vmatpush1.bf16.msra.mxu0 0
        %1468 = vmatprep.subr.bf16.mxu0 0
        %1469 = vmatpush1.bf16.msra.mxu0 0
        %1470 = vmatprep.subr.bf16.mxu0 %v1450
        %1471 = vmatpush1.bf16.msra.mxu0 %v1449
        %1472 = vmatprep.subr.bf16.mxu0 %v1448
        %1473 = vmatpush1.bf16.msra.mxu0 %v1447
        %1474 = vmatprep.subr.bf16.mxu0 %v1446
        %1475 = vmatpush1.bf16.msra.mxu0 %v1445
        %1476 = vmatprep.subr.bf16.mxu0 %v1444
        %1477 = vmatpush1.bf16.msra.mxu0 %v1443
        %1478 = vmatprep.subr.bf16.mxu0 0
        %1479 = vmatpush2.bf16.msra.mxu0 0
        %1480 = vmatprep.subr.bf16.mxu0 0
        %1481 = vmatpush2.bf16.msra.mxu0 0
        %1482 = vmatprep.subr.bf16.mxu0 0
        %1483 = vmatpush2.bf16.msra.mxu0 0
        %1484 = vmatprep.subr.bf16.mxu0 0
        %1485 = vmatpush2.bf16.msra.mxu0 0
        %1486 = vmatprep.subr.bf16.mxu0 0
        %1487 = vmatpush2.bf16.msra.mxu0 0
        %1488 = vmatprep.subr.bf16.mxu0 0
        %1489 = vmatpush2.bf16.msra.mxu0 0
        %1490 = vmatprep.subr.bf16.mxu0 0
        %1491 = vmatpush2.bf16.msra.mxu0 0
        %1492 = vmatprep.subr.bf16.mxu0 0
        %1493 = vmatpush2.bf16.msra.mxu0 0
        %1494 = vmatprep.mubr.bf16.mxu0 0
        %1495 = vmatmul.mubr.bf16.gmra.mxu0 %v1460
        %v1496 = vpop.f32.mrf.mxu0
        %v1497 = vadd.f32 0.0, %v1496
        %v1498 = vpop.f32.mrf.mxu0
        %v1499 = vadd.f32 0.0, %v1498
        %v1500 = vpop.f32.mrf.mxu0
        %v1501 = vpop.f32.mrf.mxu0
        %1502 = vdwg.mxu0
        %v1503 = vxor.u32 %v1497, 2147483648
        %v1504 = vmul.f32 %v1503, 1.442695
        %v1505 = vpow.pop %v1504
        %v1506 = vadd.f32 %v1505, 1.0
        %v1507 = vrcp.pop %v1506
        %v1508 = vmul.f32 1.0, %v1507
        %v1509 = vmul.f32 %v1497, %v1508
        %v1510 = vmul.f32 %v1509, %v1499
        %v1511 = vpack.c.bf16 %v1510, %v1510
        %v1512 = vld [vmem:[%s10] sm:$0xf]
        %v1513 = vld [vmem:[%s10 + $0x4] sm:$0xf]
        %v1514 = vld [vmem:[%s10 + $0x8] sm:$0xf]
        %v1515 = vld [vmem:[%s10 + $0xc] sm:$0xf]
        %v1516 = vld [vmem:[%s10 + $0x10] sm:$0xf]
        %v1517 = vld [vmem:[%s10 + $0x14] sm:$0xf]
        %v1518 = vld [vmem:[%s10 + $0x18] sm:$0xf]
        %v1519 = vld [vmem:[%s10 + $0x1c] sm:$0xf]
        %v1520 = vld [vmem:[%s10 + $0x20] sm:$0xf]
        %v1521 = vld [vmem:[%s10 + $0x24] sm:$0xf]
        %v1522 = vld [vmem:[%s10 + $0x28] sm:$0xf]
        %v1523 = vld [vmem:[%s10 + $0x2c] sm:$0xf]
        %v1524 = vld [vmem:[%s10 + $0x30] sm:$0xf]
        %v1525 = vld [vmem:[%s10 + $0x34] sm:$0xf]
        %v1526 = vld [vmem:[%s10 + $0x38] sm:$0xf]
        %v1527 = vld [vmem:[%s10 + $0x3c] sm:$0xf]
        %v1544 = vunpack.c.l.b16 %v1512
        %v1545 = vunpack.c.l.b16 %v1513
        %v1546 = vunpack.c.l.b16 %v1514
        %v1547 = vunpack.c.l.b16 %v1515
        %v1548 = vunpack.c.l.b16 %v1516
        %v1549 = vunpack.c.l.b16 %v1517
        %v1550 = vunpack.c.l.b16 %v1518
        %v1551 = vunpack.c.l.b16 %v1519
        %v1552 = vunpack.c.l.b16 %v1520
        %v1553 = vunpack.c.l.b16 %v1521
        %v1554 = vunpack.c.l.b16 %v1522
        %v1555 = vunpack.c.l.b16 %v1523
        %v1556 = vunpack.c.l.b16 %v1524
        %v1557 = vunpack.c.l.b16 %v1525
        %v1558 = vunpack.c.l.b16 %v1526
        %v1559 = vunpack.c.l.b16 %v1527
        %v1560 = vpack.c.b16 %v1545, %v1544
        %v1561 = vpack.c.b16 %v1547, %v1546
        %v1562 = vpack.c.b16 %v1549, %v1548
        %v1563 = vpack.c.b16 %v1551, %v1550
        %v1564 = vpack.c.b16 %v1553, %v1552
        %v1565 = vpack.c.b16 %v1555, %v1554
        %v1566 = vpack.c.b16 %v1557, %v1556
        %v1567 = vpack.c.b16 %v1559, %v1558
        %1576 = vmatprep.subr.bf16.mxu0 0
        %1577 = vmatpush1.bf16.msra.mxu0 %v1567
        %1578 = vmatprep.subr.bf16.mxu0 0
        %1579 = vmatpush1.bf16.msra.mxu0 %v1566
        %1580 = vmatprep.subr.bf16.mxu0 0
        %1581 = vmatpush1.bf16.msra.mxu0 %v1565
        %1582 = vmatprep.subr.bf16.mxu0 0
        %1583 = vmatpush1.bf16.msra.mxu0 %v1564
        %1584 = vmatprep.subr.bf16.mxu0 0
        %1585 = vmatpush1.bf16.msra.mxu0 %v1563
        %1586 = vmatprep.subr.bf16.mxu0 0
        %1587 = vmatpush1.bf16.msra.mxu0 %v1562
        %1588 = vmatprep.subr.bf16.mxu0 0
        %1589 = vmatpush1.bf16.msra.mxu0 %v1561
        %1590 = vmatprep.subr.bf16.mxu0 0
        %1591 = vmatpush1.bf16.msra.mxu0 %v1560
        %1592 = vmatprep.subr.bf16.mxu0 0
        %1593 = vmatpush2.bf16.msra.mxu0 0
        %1594 = vmatprep.subr.bf16.mxu0 0
        %1595 = vmatpush2.bf16.msra.mxu0 0
        %1596 = vmatprep.subr.bf16.mxu0 0
        %1597 = vmatpush2.bf16.msra.mxu0 0
        %1598 = vmatprep.subr.bf16.mxu0 0
        %1599 = vmatpush2.bf16.msra.mxu0 0
        %1600 = vmatprep.subr.bf16.mxu0 0
        %1601 = vmatpush2.bf16.msra.mxu0 0
        %1602 = vmatprep.subr.bf16.mxu0 0
        %1603 = vmatpush2.bf16.msra.mxu0 0
        %1604 = vmatprep.subr.bf16.mxu0 0
        %1605 = vmatpush2.bf16.msra.mxu0 0
        %1606 = vmatprep.subr.bf16.mxu0 0
        %1607 = vmatpush2.bf16.msra.mxu0 0
        %1608 = vmatprep.mubr.bf16.mxu0 0
        %1609 = vmatmul.mubr.bf16.gmra.mxu0 %v1511
        %v1610 = vpop.f32.mrf.mxu0
        %v1611 = vadd.f32 0.0, %v1610
        %v1612 = vpop.f32.mrf.mxu0
        %v1613 = vpop.f32.mrf.mxu0
        %v1614 = vpop.f32.mrf.mxu0
        %1615 = vdwg.mxu0
        %v1616 = vadd.f32 %v1393, %v1611
        %1617 = vst.msk [vmem:[%s469] sm:$0xff] %vm485, %v1616
        %s1618 = sand.u32 %s273, 1
        %s1619 = scalar_lea.sflag [#allocation4], %s1618
        %s1620 = sand.u32 %s273, 1
        %s1621 = smul.addr %s1620, 8
        %s1622 = scalar_lea.vmem [#allocation14], %s1621
        // Predicated region
        $region93: #{block_forward.1} parent=63 // pred_check
          %p1623 = pneg %p283
        $region94: #{block_forward.1} parent=63 // pred_check_branch
          %1625 = sbr.rel (%p1623) target = $region96
        $region95: #{block_forward.1} parent=63 // pred_region
          %s1627 = ssub.s32 128, 128
          %1628 = vsyncadd %s1619, %s1627
          %s1629 = smul.addr %s29, 128
          %s1630 = scalar_lea.hbm %s11, %s1629
          %s1632 = sshll.u32 %s1622, 4
          %s1633 = int_to_ptr.vmem [resolvable:$true] %s1632
          %1635 = dma.vmem_to_hbm [thread:$0]  %s1633, 128, %s1630, %s1619
        $region96: #{block_forward.1} parent=63 // pred_fallthru
          _
      $region64: #{block_forward.1} parent=5 // pred_fallthru
        _
      %p1636 = scmp.le.s32.totalorder 2, %s24
      // Predicated region
      $region97: #{block_forward.1} parent=5 // pred_check
        %p1637 = pneg %p1636
      $region98: #{block_forward.1} parent=5 // pred_check_branch
        %1639 = sbr.rel (%p1637) target = $region100
      $region99: #{block_forward.1} parent=5 // pred_region
        %s1640 = ssub.s32 %s24, 2
        // Predicated region
        $region101: #{block_forward.1} parent=99 // pred_check
          %p1641 = pneg %p289
        $region102: #{block_forward.1} parent=99 // pred_check_branch
          %1643 = sbr.rel (%p1641) target = $region104
        $region103: #{block_forward.1} parent=99 // pred_region
          %s1644 = sand.u32 %s274, 1
          %s1645 = scalar_lea.sflag [#allocation4], %s1644
          %s1646 = sand.u32 %s274, 1
          %s1647 = smul.addr %s1646, 8
          %s1648 = scalar_lea.vmem [#allocation14], %s1647
          %1649 = dma.done %s1645, 128
        $region104: #{block_forward.1} parent=99 // pred_fallthru
          _
      $region100: #{block_forward.1} parent=5 // pred_fallthru
        _
    $region6: #{block_forward.1} parent=1 // loop_footer
      %s28 = sadd.s32 1, %s24
    $region7: #{block_forward.1} parent=1 // loop_footer_branch
      %23 = sbr.rel target = $region3
    $region8: #{block_forward.1} parent=1 // loop_exit
      _
    %1650 = vsyncpa [#allocation3], 1
    %s1651 = scalar_lea.sflag [#allocation3], 1
    %1652 = vsyncpa %s1651, 1
    %1653 = vsyncpa [#allocation6], 1
    %1654 = vsyncpa [#allocation9], 1
    %1655 = vsyncpa [#allocation12], 1
    %1656 = vsyncpa [#allocation4], 1
    %s1657 = scalar_lea.sflag [#allocation4], 1
    %1658 = vsyncpa %s1657, 1

</llo_original>
